<compile_context>
chip_gen: v7x
topology: tpu7x:2x2x1
jax: 0.10.0
libtpu: 0.0.40
codegen_flags: <defaults>
</compile_context>

<pallas_src>
import functools

import jax
import jax.numpy as jnp
from jax.experimental import pallas as pl
from jax.experimental.pallas import tpu as pltpu


def _leaky_relu(h, slope=0.2):
    return jnp.where(h > 0, h, slope * h)


def _round_up(n, m):
    return ((n + m - 1) // m) * m


# --------------------------------------------------------------------------
# Hardware introspection (best effort; safe fallbacks everywhere).
# --------------------------------------------------------------------------
def _tpu_info():
    kind = ""
    try:
        kind = (jax.devices()[0].device_kind or "").lower()
    except Exception:
        pass
    is_v7 = "v7" in kind
    vmem_cap = None
    try:
        vmem_cap = int(pltpu.get_tpu_info().vmem_capacity_bytes)
    except Exception:
        vmem_cap = None
    if vmem_cap is None or vmem_cap <= 0:
        vmem_cap = (64 << 20) if is_v7 else (128 << 20)
    num_cores = 2 if is_v7 else 1            # TensorCores sharing the batch grid
    prefer_bf16 = ("v6" in kind) or is_v7    # bf16-native MXU generations
    return kind, vmem_cap, num_cores, prefer_bf16


def _vmem_limit_bytes(vmem_cap):
    # ~20% headroom for Mosaic internal scratch / cast temporaries; never claim
    # more than 100 MiB even on 128 MiB parts.
    return int(min(max(vmem_cap * 4 // 5, 16 << 20), 100 << 20))


# --------------------------------------------------------------------------
# Kernel
# --------------------------------------------------------------------------
def _coupling_kernel(x_ref,
                     w1_ref, b1_ref,
                     w2_ref, b2_ref,
                     w3_ref, b3_ref,
                     w4_ref, b4_ref,
                     out_ref,
                     *, negate, compute_dtype):
    # Matmul operands in compute_dtype (bf16 on v6e/v7x); accumulation, bias,
    # LeakyReLU and the residual add stay f32.
    xc = x_ref[...].astype(compute_dtype)                              # (TB, D)

    h = jnp.dot(xc, w1_ref[...], preferred_element_type=jnp.float32) + b1_ref[...]
    h = _leaky_relu(h)
    h = jnp.dot(h.astype(compute_dtype), w2_ref[...],
                preferred_element_type=jnp.float32) + b2_ref[...]
    h = _leaky_relu(h)
    h = jnp.dot(h.astype(compute_dtype), w3_ref[...],
                preferred_element_type=jnp.float32) + b3_ref[...]
    h = _leaky_relu(h)
    t = jnp.dot(h.astype(compute_dtype), w4_ref[...],
                preferred_element_type=jnp.float32) + b4_ref[...]       # (TB, D)

    # mask folded into W1, (1-mask) folded into W4/b4 in prepare_coupling_params,
    # so this is exactly  out = x +/- MLP(mask*x)*(1-mask).
    res = x_ref[...].astype(jnp.float32)      # re-read residual at the end
    out = res - t if negate else res + t
    out_ref[...] = out.astype(out_ref.dtype)


# --------------------------------------------------------------------------
# One-time parameter preparation (hoisted out of the per-step path).
# --------------------------------------------------------------------------
def prepare_coupling_params(params, mask, compute_dtype=None):
    """Fold mask/(1-mask) into W1/W4, pad the hidden dim, cast matmul operands.

    The result is invert-independent (the +/- sign is a static kernel flag),
    so one prepared set serves both forward and inverse.
    """
    kind, vmem_cap, num_cores, prefer_bf16 = _tpu_info()
    if compute_dtype is None:
        compute_dtype = jnp.bfloat16 if prefer_bf16 else jnp.float32
    compute_dtype = jnp.dtype(compute_dtype)

    D, H = params["w1"].shape

    h_align = 256 if (compute_dtype == jnp.dtype(jnp.bfloat16) and H > 128) else 128
    H_pad = _round_up(H, h_align)

    mask1d = mask.reshape(D).astype(jnp.float32)
    comp = 1.0 - mask1d

    # Exact algebraic folds (LeakyReLU(0)=0 keeps zero padding exact).
    w1_eff = params["w1"].astype(jnp.float32) * mask1d[:, None]        # (D, H)
    w4_eff = params["w4"].astype(jnp.float32) * comp[None, :]          # (H, D)
    b4_eff = params["b4"].reshape(1, D).astype(jnp.float32) * comp[None, :]

    def pad_cols(a):
        return jnp.pad(a, ((0, 0), (0, H_pad - a.shape[1])))

    w1p = pad_cols(w1_eff).astype(compute_dtype)                                   # (D, H_pad)
    w2p = jnp.pad(params["w2"], ((0, H_pad - H), (0, H_pad - H))).astype(compute_dtype)
    w3p = jnp.pad(params["w3"], ((0, H_pad - H), (0, H_pad - H))).astype(compute_dtype)
    w4p = jnp.pad(w4_eff, ((0, H_pad - H), (0, 0))).astype(compute_dtype)          # (H_pad, D)
    b1p = pad_cols(params["b1"].reshape(1, H).astype(jnp.float32))
    b2p = pad_cols(params["b2"].reshape(1, H).astype(jnp.float32))
    b3p = pad_cols(params["b3"].reshape(1, H).astype(jnp.float32))
    b4p = b4_eff                                                                   # (1, D)

    return dict(w1=w1p, b1=b1p, w2=w2p, b2=b2p, w3=w3p, b3=b3p, w4=w4p, b4=b4p,
                D=D, H=H, H_pad=H_pad, compute_dtype=compute_dtype,
                vmem_cap=vmem_cap, num_cores=num_cores)


def _xla_fallback(prep, x, invert):
    cd = prep["compute_dtype"]

    def dot(a, w):
        return jnp.dot(a.astype(cd), w, preferred_element_type=jnp.float32)

    h = _leaky_relu(dot(x, prep["w1"]) + prep["b1"])
    h = _leaky_relu(dot(h, prep["w2"]) + prep["b2"])
    h = _leaky_relu(dot(h, prep["w3"]) + prep["b3"])
    t = dot(h, prep["w4"]) + prep["b4"]
    xf = x.astype(jnp.float32)
    y = xf - t if invert else xf + t
    return y.astype(x.dtype)


# --------------------------------------------------------------------------
# Apply (the per-step path: a single pallas_call).
# --------------------------------------------------------------------------
def coupling_layer_apply(prep, x, logdet, invert=False, max_batch_tile=None):
    B, D = x.shape
    assert D == prep["D"], "data_dim mismatch with prepared params"
    H_pad = prep["H_pad"]
    compute_dtype = prep["compute_dtype"]
    num_cores = prep["num_cores"]

    vmem_limit = _vmem_limit_bytes(prep["vmem_cap"])
    w_item = compute_dtype.itemsize
    weight_bytes = (D * H_pad + 2 * H_pad * H_pad + H_pad * D) * w_item
    bias_bytes = (3 * H_pad + D) * 4
    resident = weight_bytes + bias_bytes                 # single-buffered residents
    margin = 6 << 20                                     # Mosaic scratch / temporaries
    # per batch-row: double-buffered x + out tiles (f32) + activation temporaries
    per_row = (2 * 2 * D * 4) + (4 * H_pad * 4) + (2 * H_pad * w_item)

    if resident + margin + 8 * per_row > vmem_limit:
        # TODO(synk): stream w2/w3 over an H-tiled "arbitrary" grid axis (or
        # pltpu.emit_pipeline) when the resident weights exceed VMEM (v7x 64 MiB)
        # instead of falling back to plain XLA.
        return _xla_fallback(prep, x, invert), logdet

    # ---- VMEM-budget-derived batch tile -----------------------------------
    avail = vmem_limit - resident - margin
    TB = (int(avail // per_row) // 8) * 8
    TB = max(8, min(TB, 1024, _round_up(B, 8)))
    if num_cores >= 2 and B > 8:
        # guarantee >= num_cores grid steps so every TensorCore gets work (v7x)
        TB = min(TB, max(8, _round_up(pl.cdiv(B, num_cores), 8)))
    if max_batch_tile is not None:
        TB = min(TB, max(8, _round_up(int(max_batch_tile), 8)))
    if B < 8:
        TB = B                                           # full-dim block for tiny batches
    grid = (pl.cdiv(B, TB),)

    flops = 2 * B * H_pad * (2 * D + 2 * H_pad)
    cost = pl.CostEstimate(flops=flops, transcendentals=0,
                           bytes_accessed=2 * B * D * 4 + weight_bytes + bias_bytes)

    kernel = functools.partial(_coupling_kernel,
                               negate=bool(invert),
                               compute_dtype=compute_dtype)

    x_spec = pl.BlockSpec((TB, D), lambda i: (i, 0))
    out_spec = pl.BlockSpec((TB, D), lambda i: (i, 0))

    def const_spec(shape, single):
        # constant index_map -> block never changes; request a single VMEM buffer
        if single:
            return pl.BlockSpec(shape, lambda i: (0, 0), pipeline_mode=pl.Buffered(1))
        return pl.BlockSpec(shape, lambda i: (0, 0))

    last_err = None
    for single in (True, False):   # fall back to default buffering if rejected
        try:
            call = pl.pallas_call(
                kernel,
                grid=grid,
                out_shape=jax.ShapeDtypeStruct((B, D), x.dtype),
                in_specs=[
                    x_spec,
                    const_spec((D, H_pad), single), const_spec((1, H_pad), single),
                    const_spec((H_pad, H_pad), single), const_spec((1, H_pad), single),
                    const_spec((H_pad, H_pad), single), const_spec((1, H_pad), single),
                    const_spec((H_pad, D), single), const_spec((1, D), single),
                ],
                out_specs=out_spec,
                compiler_params=pltpu.CompilerParams(
                    dimension_semantics=("parallel",),
                    vmem_limit_bytes=vmem_limit,
                ),
                cost_estimate=cost,
            )
            y = call(x, prep["w1"], prep["b1"], prep["w2"], prep["b2"],
                     prep["w3"], prep["b3"], prep["w4"], prep["b4"])
            return y, logdet
        except Exception as e:  # noqa: BLE001 - retry once with default buffering
            last_err = e
    raise last_err


def coupling_layer_forward(x, logdet, mask, params, invert=False,
                           compute_dtype=None, max_batch_tile=None):
    """Convenience one-shot wrapper (prep is not cached here)."""
    prep = prepare_coupling_params(params, mask, compute_dtype)
    return coupling_layer_apply(prep, x, logdet, invert=invert,
                                max_batch_tile=max_batch_tile)


# --------------------------------------------------------------------------
# Reference + params
# --------------------------------------------------------------------------
def init_params(key, data_dim, hidden_dim):
    """Deterministic synthetic params. Weights stored as (in, out)."""
    ks = jax.random.split(key, 8)

    def lin(kw, kb, d_in, d_out):
        bound = 1.0 / jnp.sqrt(d_in)
        w = jax.random.uniform(kw, (d_in, d_out), jnp.float32, -bound, bound)
        b = jax.random.uniform(kb, (1, d_out), jnp.float32, -bound, bound)
        return w, b

    w1, b1 = lin(ks[0], ks[1], data_dim, hidden_dim)
    w2, b2 = lin(ks[2], ks[3], hidden_dim, hidden_dim)
    w3, b3 = lin(ks[4], ks[5], hidden_dim, hidden_dim)
    w4, b4 = lin(ks[6], ks[7], hidden_dim, data_dim)
    return dict(w1=w1, b1=b1, w2=w2, b2=b2, w3=w3, b3=b3, w4=w4, b4=b4)


def reference_forward(x, logdet, mask, params, invert=False):
    """Pure-JAX reference mirroring the PyTorch module."""
    mask = mask.reshape(1, -1)

    def mlp(z):
        h = _leaky_relu(z @ params["w1"] + params["b1"])
        h = _leaky_relu(h @ params["w2"] + params["b2"])
        h = _leaky_relu(h @ params["w3"] + params["b3"])
        return h @ params["w4"] + params["b4"]

    if not invert:
        x1, x2 = mask * x, (1 - mask) * x
        y1, y2 = x1, x2 + mlp(x1) * (1.0 - mask)
        return y1 + y2, logdet
    y1, y2 = mask * x, (1 - mask) * x
    x1, x2 = y1, y2 - mlp(y1) * (1.0 - mask)
    return x1 + x2, logdet


if __name__ == "__main__":
    data_dim = 16
    hidden_dim = 32
    batch = 2

    key = jax.random.PRNGKey(0)
    kx, kp, kb = jax.random.split(key, 3)

    x = jax.random.normal(kx, (batch, data_dim), jnp.float32)
    logdet = jnp.zeros((batch,), jnp.float32)
    # alternating binary mask (even indices = 1), as commonly used with NICE
    mask = (jnp.arange(data_dim) % 2 == 0).astype(jnp.float32)
    params = init_params(kp, data_dim, hidden_dim)

    # ---- exact f32 path: prepare once, reuse for forward and inverse
    prep32 = prepare_coupling_params(params, mask, compute_dtype=jnp.float32)

    y, ld = coupling_layer_apply(prep32, x, logdet, invert=False)
    y = jax.block_until_ready(y)
    y_ref, _ = reference_forward(x, logdet, mask, params, invert=False)
    assert jnp.allclose(y, y_ref, atol=1e-5, rtol=1e-5), "forward mismatch"
    assert jnp.allclose(ld, logdet), "logdet should pass through unchanged"

    # inverse round-trip: invert(forward(x)) == x
    x_rec, _ = coupling_layer_apply(prep32, y, logdet, invert=True)
    x_rec = jax.block_until_ready(x_rec)
    assert jnp.allclose(x_rec, x, atol=1e-5, rtol=1e-5), "inverse mismatch"

    # ---- larger batch: multi-step pipelined grid + ragged edge block masking
    big_b = 200
    xb = jax.random.normal(kb, (big_b, data_dim), jnp.float32)
    ldb = jnp.zeros((big_b,), jnp.float32)
    yb, _ = coupling_layer_apply(prep32, xb, ldb, invert=False, max_batch_tile=64)
    yb = jax.block_until_ready(yb)
    yb_ref, _ = reference_forward(xb, ldb, mask, params, invert=False)
    assert jnp.allclose(yb, yb_ref, atol=1e-5, rtol=1e-5), "batched forward mismatch"

    # ---- auto dtype path (bf16 matmul operands on v6e/v7x, f32 elsewhere)
    prep_auto = prepare_coupling_params(params, mask)
    y_auto, _ = coupling_layer_apply(prep_auto, x, logdet, invert=False)
    y_auto = jax.block_until_ready(y_auto)
    assert jnp.allclose(y_auto, y_ref, atol=5e-2, rtol=5e-2), "auto-dtype path mismatch"

    print("KERNEL_OK")
</pallas_src>

<mosaic_0001>
module attributes {stable_mosaic.version = 11 : i64} {
  func.func @_coupling_kernel(%arg0: i32, %arg1: memref<2x16xf32, #tpu.memory_space<vmem>>, %arg2: memref<16x128xf32, #tpu.memory_space<vmem>>, %arg3: memref<1x128xf32, #tpu.memory_space<vmem>>, %arg4: memref<128x128xf32, #tpu.memory_space<vmem>>, %arg5: memref<1x128xf32, #tpu.memory_space<vmem>>, %arg6: memref<128x128xf32, #tpu.memory_space<vmem>>, %arg7: memref<1x128xf32, #tpu.memory_space<vmem>>, %arg8: memref<128x16xf32, #tpu.memory_space<vmem>>, %arg9: memref<1x16xf32, #tpu.memory_space<vmem>>, %arg10: memref<2x16xf32, #tpu.memory_space<vmem>>) attributes {dimension_semantics = [#tpu.dimension_semantics<parallel>], iteration_bounds = array<i64: 1>, scalar_prefetch = 0 : i64, scratch_operands = 0 : i64, tpu.core_type = #tpu.core_type<tc>, window_params = [{transform_indices = @transform_0, window_bounds = array<i64: 2, 16>}, {pipeline_mode = #tpu.pipeline_mode<synchronous>, transform_indices = @transform_1, window_bounds = array<i64: 16, 128>}, {pipeline_mode = #tpu.pipeline_mode<synchronous>, transform_indices = @transform_2, window_bounds = array<i64: 1, 128>}, {pipeline_mode = #tpu.pipeline_mode<synchronous>, transform_indices = @transform_3, window_bounds = array<i64: 128, 128>}, {pipeline_mode = #tpu.pipeline_mode<synchronous>, transform_indices = @transform_4, window_bounds = array<i64: 1, 128>}, {pipeline_mode = #tpu.pipeline_mode<synchronous>, transform_indices = @transform_5, window_bounds = array<i64: 128, 128>}, {pipeline_mode = #tpu.pipeline_mode<synchronous>, transform_indices = @transform_6, window_bounds = array<i64: 1, 128>}, {pipeline_mode = #tpu.pipeline_mode<synchronous>, transform_indices = @transform_7, window_bounds = array<i64: 128, 16>}, {pipeline_mode = #tpu.pipeline_mode<synchronous>, transform_indices = @transform_8, window_bounds = array<i64: 1, 16>}, {transform_indices = @transform_9, window_bounds = array<i64: 2, 16>}]} {
    %c0 = arith.constant 0 : index
    %c0_0 = arith.constant 0 : index
    %0 = vector.load %arg1[%c0, %c0_0] : memref<2x16xf32, #tpu.memory_space<vmem>>, vector<2x16xf32>
    %c0_1 = arith.constant 0 : index
    %c0_2 = arith.constant 0 : index
    %1 = vector.load %arg2[%c0_1, %c0_2] : memref<16x128xf32, #tpu.memory_space<vmem>>, vector<16x128xf32>
    %cst = arith.constant dense<0.000000e+00> : vector<2x128xf32>
    %2 = tpu.matmul %0, %1, %cst {dimension_numbers = #tpu.dot_dimension_numbers<[1], [0], [0], [1], [0, 0, 1, 1], [], []>} : vector<2x16xf32>, vector<16x128xf32>, vector<2x128xf32> -> vector<2x128xf32>
    %c0_3 = arith.constant 0 : index
    %c0_4 = arith.constant 0 : index
    %3 = vector.load %arg3[%c0_3, %c0_4] : memref<1x128xf32, #tpu.memory_space<vmem>>, vector<1x128xf32>
    %4 = vector.broadcast %3 : vector<1x128xf32> to vector<2x128xf32>
    %5 = arith.addf %2, %4 : vector<2x128xf32>
    %cst_5 = arith.constant 0.000000e+00 : f32
    %6 = vector.broadcast %cst_5 : f32 to vector<2x128xf32>
    %7 = arith.cmpf ogt, %5, %6 : vector<2x128xf32>
    %cst_6 = arith.constant 2.000000e-01 : f32
    %8 = vector.broadcast %cst_6 : f32 to vector<2x128xf32>
    %9 = arith.mulf %8, %5 : vector<2x128xf32>
    %10 = arith.select %7, %5, %9 : vector<2x128xi1>, vector<2x128xf32>
    %c0_7 = arith.constant 0 : index
    %c0_8 = arith.constant 0 : index
    %11 = vector.load %arg4[%c0_7, %c0_8] : memref<128x128xf32, #tpu.memory_space<vmem>>, vector<128x128xf32>
    %cst_9 = arith.constant dense<0.000000e+00> : vector<2x128xf32>
    %12 = tpu.matmul %10, %11, %cst_9 {dimension_numbers = #tpu.dot_dimension_numbers<[1], [0], [0], [1], [0, 0, 1, 1], [], []>} : vector<2x128xf32>, vector<128x128xf32>, vector<2x128xf32> -> vector<2x128xf32>
    %c0_10 = arith.constant 0 : index
    %c0_11 = arith.constant 0 : index
    %13 = vector.load %arg5[%c0_10, %c0_11] : memref<1x128xf32, #tpu.memory_space<vmem>>, vector<1x128xf32>
    %14 = vector.broadcast %13 : vector<1x128xf32> to vector<2x128xf32>
    %15 = arith.addf %12, %14 : vector<2x128xf32>
    %cst_12 = arith.constant 0.000000e+00 : f32
    %16 = vector.broadcast %cst_12 : f32 to vector<2x128xf32>
    %17 = arith.cmpf ogt, %15, %16 : vector<2x128xf32>
    %cst_13 = arith.constant 2.000000e-01 : f32
    %18 = vector.broadcast %cst_13 : f32 to vector<2x128xf32>
    %19 = arith.mulf %18, %15 : vector<2x128xf32>
    %20 = arith.select %17, %15, %19 : vector<2x128xi1>, vector<2x128xf32>
    %c0_14 = arith.constant 0 : index
    %c0_15 = arith.constant 0 : index
    %21 = vector.load %arg6[%c0_14, %c0_15] : memref<128x128xf32, #tpu.memory_space<vmem>>, vector<128x128xf32>
    %cst_16 = arith.constant dense<0.000000e+00> : vector<2x128xf32>
    %22 = tpu.matmul %20, %21, %cst_16 {dimension_numbers = #tpu.dot_dimension_numbers<[1], [0], [0], [1], [0, 0, 1, 1], [], []>} : vector<2x128xf32>, vector<128x128xf32>, vector<2x128xf32> -> vector<2x128xf32>
    %c0_17 = arith.constant 0 : index
    %c0_18 = arith.constant 0 : index
    %23 = vector.load %arg7[%c0_17, %c0_18] : memref<1x128xf32, #tpu.memory_space<vmem>>, vector<1x128xf32>
    %24 = vector.broadcast %23 : vector<1x128xf32> to vector<2x128xf32>
    %25 = arith.addf %22, %24 : vector<2x128xf32>
    %cst_19 = arith.constant 0.000000e+00 : f32
    %26 = vector.broadcast %cst_19 : f32 to vector<2x128xf32>
    %27 = arith.cmpf ogt, %25, %26 : vector<2x128xf32>
    %cst_20 = arith.constant 2.000000e-01 : f32
    %28 = vector.broadcast %cst_20 : f32 to vector<2x128xf32>
    %29 = arith.mulf %28, %25 : vector<2x128xf32>
    %30 = arith.select %27, %25, %29 : vector<2x128xi1>, vector<2x128xf32>
    %c0_21 = arith.constant 0 : index
    %c0_22 = arith.constant 0 : index
    %31 = vector.load %arg8[%c0_21, %c0_22] : memref<128x16xf32, #tpu.memory_space<vmem>>, vector<128x16xf32>
    %cst_23 = arith.constant dense<0.000000e+00> : vector<2x16xf32>
    %32 = tpu.matmul %30, %31, %cst_23 {dimension_numbers = #tpu.dot_dimension_numbers<[1], [0], [0], [1], [0, 0, 1, 1], [], []>} : vector<2x128xf32>, vector<128x16xf32>, vector<2x16xf32> -> vector<2x16xf32>
    %c0_24 = arith.constant 0 : index
    %c0_25 = arith.constant 0 : index
    %33 = vector.load %arg9[%c0_24, %c0_25] : memref<1x16xf32, #tpu.memory_space<vmem>>, vector<1x16xf32>
    %34 = vector.broadcast %33 : vector<1x16xf32> to vector<2x16xf32>
    %35 = arith.addf %32, %34 : vector<2x16xf32>
    %c0_26 = arith.constant 0 : index
    %c0_27 = arith.constant 0 : index
    %36 = vector.load %arg1[%c0_26, %c0_27] : memref<2x16xf32, #tpu.memory_space<vmem>>, vector<2x16xf32>
    %37 = arith.addf %36, %35 : vector<2x16xf32>
    %c0_28 = arith.constant 0 : index
    %c0_29 = arith.constant 0 : index
    %38 = vector.load %arg10[%c0_28, %c0_29] : memref<2x16xf32, #tpu.memory_space<vmem>>, vector<2x16xf32>
    tpu.vector_store %arg10[%c0_28, %c0_29], %37 {strides = array<i32>} : memref<2x16xf32, #tpu.memory_space<vmem>>, vector<2x16xf32>,
    return
  }
  func.func @transform_0(%arg0: i32) -> (i32, i32) {
    %c0_i32 = arith.constant 0 : i32
    %c0_i32_0 = arith.constant 0 : i32
    return %arg0, %c0_i32 : i32, i32
  }
  func.func @transform_1(%arg0: i32) -> (i32, i32) {
    %c0_i32 = arith.constant 0 : i32
    %c0_i32_0 = arith.constant 0 : i32
    %c0_i32_1 = arith.constant 0 : i32
    return %c0_i32, %c0_i32_0 : i32, i32
  }
  func.func @transform_2(%arg0: i32) -> (i32, i32) {
    %c0_i32 = arith.constant 0 : i32
    %c0_i32_0 = arith.constant 0 : i32
    %c0_i32_1 = arith.constant 0 : i32
    return %c0_i32, %c0_i32_0 : i32, i32
  }
  func.func @transform_3(%arg0: i32) -> (i32, i32) {
    %c0_i32 = arith.constant 0 : i32
    %c0_i32_0 = arith.constant 0 : i32
    %c0_i32_1 = arith.constant 0 : i32
    return %c0_i32, %c0_i32_0 : i32, i32
  }
  func.func @transform_4(%arg0: i32) -> (i32, i32) {
    %c0_i32 = arith.constant 0 : i32
    %c0_i32_0 = arith.constant 0 : i32
    %c0_i32_1 = arith.constant 0 : i32
    return %c0_i32, %c0_i32_0 : i32, i32
  }
  func.func @transform_5(%arg0: i32) -> (i32, i32) {
    %c0_i32 = arith.constant 0 : i32
    %c0_i32_0 = arith.constant 0 : i32
    %c0_i32_1 = arith.constant 0 : i32
    return %c0_i32, %c0_i32_0 : i32, i32
  }
  func.func @transform_6(%arg0: i32) -> (i32, i32) {
    %c0_i32 = arith.constant 0 : i32
    %c0_i32_0 = arith.constant 0 : i32
    %c0_i32_1 = arith.constant 0 : i32
    return %c0_i32, %c0_i32_0 : i32, i32
  }
  func.func @transform_7(%arg0: i32) -> (i32, i32) {
    %c0_i32 = arith.constant 0 : i32
    %c0_i32_0 = arith.constant 0 : i32
    %c0_i32_1 = arith.constant 0 : i32
    return %c0_i32, %c0_i32_0 : i32, i32
  }
  func.func @transform_8(%arg0: i32) -> (i32, i32) {
    %c0_i32 = arith.constant 0 : i32
    %c0_i32_0 = arith.constant 0 : i32
    %c0_i32_1 = arith.constant 0 : i32
    return %c0_i32, %c0_i32_0 : i32, i32
  }
  func.func @transform_9(%arg0: i32) -> (i32, i32) {
    %c0_i32 = arith.constant 0 : i32
    %c0_i32_0 = arith.constant 0 : i32
    return %arg0, %c0_i32 : i32, i32
  }
}

module attributes {stable_mosaic.version = 11 : i64} {
  func.func @_coupling_kernel(%arg0: i32, %arg1: memref<2x16xf32, #tpu.memory_space<vmem>>, %arg2: memref<16x128xf32, #tpu.memory_space<vmem>>, %arg3: memref<1x128xf32, #tpu.memory_space<vmem>>, %arg4: memref<128x128xf32, #tpu.memory_space<vmem>>, %arg5: memref<1x128xf32, #tpu.memory_space<vmem>>, %arg6: memref<128x128xf32, #tpu.memory_space<vmem>>, %arg7: memref<1x128xf32, #tpu.memory_space<vmem>>, %arg8: memref<128x16xf32, #tpu.memory_space<vmem>>, %arg9: memref<1x16xf32, #tpu.memory_space<vmem>>, %arg10: memref<2x16xf32, #tpu.memory_space<vmem>>) attributes {dimension_semantics = [#tpu.dimension_semantics<parallel>], iteration_bounds = array<i64: 1>, scalar_prefetch = 0 : i64, scratch_operands = 0 : i64, tpu.core_type = #tpu.core_type<tc>, window_params = [{transform_indices = @transform_0, window_bounds = array<i64: 2, 16>}, {pipeline_mode = #tpu.pipeline_mode<synchronous>, transform_indices = @transform_1, window_bounds = array<i64: 16, 128>}, {pipeline_mode = #tpu.pipeline_mode<synchronous>, transform_indices = @transform_2, window_bounds = array<i64: 1, 128>}, {pipeline_mode = #tpu.pipeline_mode<synchronous>, transform_indices = @transform_3, window_bounds = array<i64: 128, 128>}, {pipeline_mode = #tpu.pipeline_mode<synchronous>, transform_indices = @transform_4, window_bounds = array<i64: 1, 128>}, {pipeline_mode = #tpu.pipeline_mode<synchronous>, transform_indices = @transform_5, window_bounds = array<i64: 128, 128>}, {pipeline_mode = #tpu.pipeline_mode<synchronous>, transform_indices = @transform_6, window_bounds = array<i64: 1, 128>}, {pipeline_mode = #tpu.pipeline_mode<synchronous>, transform_indices = @transform_7, window_bounds = array<i64: 128, 16>}, {pipeline_mode = #tpu.pipeline_mode<synchronous>, transform_indices = @transform_8, window_bounds = array<i64: 1, 16>}, {transform_indices = @transform_9, window_bounds = array<i64: 2, 16>}]} {
    %c0 = arith.constant 0 : index
    %c0_0 = arith.constant 0 : index
    %0 = vector.load %arg1[%c0, %c0_0] : memref<2x16xf32, #tpu.memory_space<vmem>>, vector<2x16xf32>
    %c0_1 = arith.constant 0 : index
    %c0_2 = arith.constant 0 : index
    %1 = vector.load %arg2[%c0_1, %c0_2] : memref<16x128xf32, #tpu.memory_space<vmem>>, vector<16x128xf32>
    %cst = arith.constant dense<0.000000e+00> : vector<2x128xf32>
    %2 = tpu.matmul %0, %1, %cst {dimension_numbers = #tpu.dot_dimension_numbers<[1], [0], [0], [1], [0, 0, 1, 1], [], []>} : vector<2x16xf32>, vector<16x128xf32>, vector<2x128xf32> -> vector<2x128xf32>
    %c0_3 = arith.constant 0 : index
    %c0_4 = arith.constant 0 : index
    %3 = vector.load %arg3[%c0_3, %c0_4] : memref<1x128xf32, #tpu.memory_space<vmem>>, vector<1x128xf32>
    %4 = vector.broadcast %3 : vector<1x128xf32> to vector<2x128xf32>
    %5 = arith.addf %2, %4 : vector<2x128xf32>
    %cst_5 = arith.constant 0.000000e+00 : f32
    %6 = vector.broadcast %cst_5 : f32 to vector<2x128xf32>
    %7 = arith.cmpf ogt, %5, %6 : vector<2x128xf32>
    %cst_6 = arith.constant 2.000000e-01 : f32
    %8 = vector.broadcast %cst_6 : f32 to vector<2x128xf32>
    %9 = arith.mulf %8, %5 : vector<2x128xf32>
    %10 = arith.select %7, %5, %9 : vector<2x128xi1>, vector<2x128xf32>
    %c0_7 = arith.constant 0 : index
    %c0_8 = arith.constant 0 : index
    %11 = vector.load %arg4[%c0_7, %c0_8] : memref<128x128xf32, #tpu.memory_space<vmem>>, vector<128x128xf32>
    %cst_9 = arith.constant dense<0.000000e+00> : vector<2x128xf32>
    %12 = tpu.matmul %10, %11, %cst_9 {dimension_numbers = #tpu.dot_dimension_numbers<[1], [0], [0], [1], [0, 0, 1, 1], [], []>} : vector<2x128xf32>, vector<128x128xf32>, vector<2x128xf32> -> vector<2x128xf32>
    %c0_10 = arith.constant 0 : index
    %c0_11 = arith.constant 0 : index
    %13 = vector.load %arg5[%c0_10, %c0_11] : memref<1x128xf32, #tpu.memory_space<vmem>>, vector<1x128xf32>
    %14 = vector.broadcast %13 : vector<1x128xf32> to vector<2x128xf32>
    %15 = arith.addf %12, %14 : vector<2x128xf32>
    %cst_12 = arith.constant 0.000000e+00 : f32
    %16 = vector.broadcast %cst_12 : f32 to vector<2x128xf32>
    %17 = arith.cmpf ogt, %15, %16 : vector<2x128xf32>
    %cst_13 = arith.constant 2.000000e-01 : f32
    %18 = vector.broadcast %cst_13 : f32 to vector<2x128xf32>
    %19 = arith.mulf %18, %15 : vector<2x128xf32>
    %20 = arith.select %17, %15, %19 : vector<2x128xi1>, vector<2x128xf32>
    %c0_14 = arith.constant 0 : index
    %c0_15 = arith.constant 0 : index
    %21 = vector.load %arg6[%c0_14, %c0_15] : memref<128x128xf32, #tpu.memory_space<vmem>>, vector<128x128xf32>
    %cst_16 = arith.constant dense<0.000000e+00> : vector<2x128xf32>
    %22 = tpu.matmul %20, %21, %cst_16 {dimension_numbers = #tpu.dot_dimension_numbers<[1], [0], [0], [1], [0, 0, 1, 1], [], []>} : vector<2x128xf32>, vector<128x128xf32>, vector<2x128xf32> -> vector<2x128xf32>
    %c0_17 = arith.constant 0 : index
    %c0_18 = arith.constant 0 : index
    %23 = vector.load %arg7[%c0_17, %c0_18] : memref<1x128xf32, #tpu.memory_space<vmem>>, vector<1x128xf32>
    %24 = vector.broadcast %23 : vector<1x128xf32> to vector<2x128xf32>
    %25 = arith.addf %22, %24 : vector<2x128xf32>
    %cst_19 = arith.constant 0.000000e+00 : f32
    %26 = vector.broadcast %cst_19 : f32 to vector<2x128xf32>
    %27 = arith.cmpf ogt, %25, %26 : vector<2x128xf32>
    %cst_20 = arith.constant 2.000000e-01 : f32
    %28 = vector.broadcast %cst_20 : f32 to vector<2x128xf32>
    %29 = arith.mulf %28, %25 : vector<2x128xf32>
    %30 = arith.select %27, %25, %29 : vector<2x128xi1>, vector<2x128xf32>
    %c0_21 = arith.constant 0 : index
    %c0_22 = arith.constant 0 : index
    %31 = vector.load %arg8[%c0_21, %c0_22] : memref<128x16xf32, #tpu.memory_space<vmem>>, vector<128x16xf32>
    %cst_23 = arith.constant dense<0.000000e+00> : vector<2x16xf32>
    %32 = tpu.matmul %30, %31, %cst_23 {dimension_numbers = #tpu.dot_dimension_numbers<[1], [0], [0], [1], [0, 0, 1, 1], [], []>} : vector<2x128xf32>, vector<128x16xf32>, vector<2x16xf32> -> vector<2x16xf32>
    %c0_24 = arith.constant 0 : index
    %c0_25 = arith.constant 0 : index
    %33 = vector.load %arg9[%c0_24, %c0_25] : memref<1x16xf32, #tpu.memory_space<vmem>>, vector<1x16xf32>
    %34 = vector.broadcast %33 : vector<1x16xf32> to vector<2x16xf32>
    %35 = arith.addf %32, %34 : vector<2x16xf32>
    %c0_26 = arith.constant 0 : index
    %c0_27 = arith.constant 0 : index
    %36 = vector.load %arg1[%c0_26, %c0_27] : memref<2x16xf32, #tpu.memory_space<vmem>>, vector<2x16xf32>
    %37 = arith.addf %36, %35 : vector<2x16xf32>
    %c0_28 = arith.constant 0 : index
    %c0_29 = arith.constant 0 : index
    %38 = vector.load %arg10[%c0_28, %c0_29] : memref<2x16xf32, #tpu.memory_space<vmem>>, vector<2x16xf32>
    tpu.vector_store %arg10[%c0_28, %c0_29], %37 {strides = array<i32>} : memref<2x16xf32, #tpu.memory_space<vmem>>, vector<2x16xf32>,
    return
  }
  func.func @transform_0(%arg0: i32) -> (i32, i32) {
    %c0_i32 = arith.constant 0 : i32
    %c0_i32_0 = arith.constant 0 : i32
    return %arg0, %c0_i32 : i32, i32
  }
  func.func @transform_1(%arg0: i32) -> (i32, i32) {
    %c0_i32 = arith.constant 0 : i32
    %c0_i32_0 = arith.constant 0 : i32
    %c0_i32_1 = arith.constant 0 : i32
    return %c0_i32, %c0_i32_0 : i32, i32
  }
  func.func @transform_2(%arg0: i32) -> (i32, i32) {
    %c0_i32 = arith.constant 0 : i32
    %c0_i32_0 = arith.constant 0 : i32
    %c0_i32_1 = arith.constant 0 : i32
    return %c0_i32, %c0_i32_0 : i32, i32
  }
  func.func @transform_3(%arg0: i32) -> (i32, i32) {
    %c0_i32 = arith.constant 0 : i32
    %c0_i32_0 = arith.constant 0 : i32
    %c0_i32_1 = arith.constant 0 : i32
    return %c0_i32, %c0_i32_0 : i32, i32
  }
  func.func @transform_4(%arg0: i32) -> (i32, i32) {
    %c0_i32 = arith.constant 0 : i32
    %c0_i32_0 = arith.constant 0 : i32
    %c0_i32_1 = arith.constant 0 : i32
    return %c0_i32, %c0_i32_0 : i32, i32
  }
  func.func @transform_5(%arg0: i32) -> (i32, i32) {
    %c0_i32 = arith.constant 0 : i32
    %c0_i32_0 = arith.constant 0 : i32
    %c0_i32_1 = arith.constant 0 : i32
    return %c0_i32, %c0_i32_0 : i32, i32
  }
  func.func @transform_6(%arg0: i32) -> (i32, i32) {
    %c0_i32 = arith.constant 0 : i32
    %c0_i32_0 = arith.constant 0 : i32
    %c0_i32_1 = arith.constant 0 : i32
    return %c0_i32, %c0_i32_0 : i32, i32
  }
  func.func @transform_7(%arg0: i32) -> (i32, i32) {
    %c0_i32 = arith.constant 0 : i32
    %c0_i32_0 = arith.constant 0 : i32
    %c0_i32_1 = arith.constant 0 : i32
    return %c0_i32, %c0_i32_0 : i32, i32
  }
  func.func @transform_8(%arg0: i32) -> (i32, i32) {
    %c0_i32 = arith.constant 0 : i32
    %c0_i32_0 = arith.constant 0 : i32
    %c0_i32_1 = arith.constant 0 : i32
    return %c0_i32, %c0_i32_0 : i32, i32
  }
  func.func @transform_9(%arg0: i32) -> (i32, i32) {
    %c0_i32 = arith.constant 0 : i32
    %c0_i32_0 = arith.constant 0 : i32
    return %arg0, %c0_i32 : i32, i32
  }
}

</mosaic_0001>

<llo_original>
// kernel: tpu_custom_call.1
$region0: #{tpu_custom_call.1}
  #allocation0 [shape = 'u32[]', space=smem, size = 0x4, offset = 0x4, fixed_abs, tag = 'smem constant byte address 0x4 - core index']
  #allocation1 [shape = 'u32[144,128]{1,0:T(1,128)}', space=vmem, size = 0x12000, scoped, tag = 'internal scratch']
  %s0 = inlined_call_operand.hbm [shape: f32[2,16], index: 0, kind: input, shape index: {}]
  %s1 = inlined_call_operand.hbm [shape: f32[16,128], index: 1, kind: input, shape index: {}]
  %s2 = inlined_call_operand.hbm [shape: f32[1,128], index: 2, kind: input, shape index: {}]
  %s3 = inlined_call_operand.hbm [shape: f32[128,128], index: 3, kind: input, shape index: {}]
  %s4 = inlined_call_operand.hbm [shape: f32[1,128], index: 4, kind: input, shape index: {}]
  %s5 = inlined_call_operand.hbm [shape: f32[128,128], index: 5, kind: input, shape index: {}]
  %s6 = inlined_call_operand.hbm [shape: f32[1,128], index: 6, kind: input, shape index: {}]
  %s7 = inlined_call_operand.hbm [shape: f32[128,16], index: 7, kind: input, shape index: {}]
  %s8 = inlined_call_operand.hbm [shape: f32[1,16], index: 8, kind: input, shape index: {}]
  %s9 = inlined_call_operand.hbm [shape: f32[2,16], index: 9, kind: output, shape index: {}]
  %s10 = sld [smem:[#allocation0]]
  $region82: #{tpu_custom_call.1} parent=0
    _
  %s12 = ssub.s32 1, %s10
  %s13 = scalar_select 0, %s12, %s10
  $region1: #{tpu_custom_call.1} parent=0
    #allocation2 [shape = 'u8[1024]{0}', space=vmem, size = 0x400, scoped, tag = 'input window, operand 0, single buffered']
    #allocation3 [shape = 's32[1]{0}', space=sflag, size = 0x4, scoped, tag = 'scoped memory for tpu_custom_call.1']
    #allocation4 [shape = 's32[1]{0}', space=sflag, size = 0x4, scoped, tag = 'scoped memory for tpu_custom_call.1']
    #allocation5 [shape = 'u8[8192]{0}', space=vmem, size = 0x2000, scoped, tag = 'input window, operand 1, single buffered']
    #allocation6 [shape = 's32[1]{0}', space=sflag, size = 0x4, scoped, tag = 'scoped memory for tpu_custom_call.1']
    #allocation7 [shape = 'u8[512]{0}', space=vmem, size = 0x400, scoped, tag = 'input window, operand 2, single buffered']
    #allocation8 [shape = 'u8[65536]{0}', space=vmem, size = 0x10000, scoped, tag = 'input window, operand 3, single buffered']
    #allocation9 [shape = 's32[1]{0}', space=sflag, size = 0x4, scoped, tag = 'scoped memory for tpu_custom_call.1']
    #allocation10 [shape = 'u8[512]{0}', space=vmem, size = 0x400, scoped, tag = 'input window, operand 4, single buffered']
    #allocation11 [shape = 'u8[65536]{0}', space=vmem, size = 0x10000, scoped, tag = 'input window, operand 5, single buffered']
    #allocation12 [shape = 's32[1]{0}', space=sflag, size = 0x4, scoped, tag = 'scoped memory for tpu_custom_call.1']
    #allocation13 [shape = 'u8[512]{0}', space=vmem, size = 0x400, scoped, tag = 'input window, operand 6, single buffered']
    #allocation14 [shape = 'u8[65536]{0}', space=vmem, size = 0x10000, scoped, tag = 'input window, operand 7, single buffered']
    #allocation15 [shape = 's32[1]{0}', space=sflag, size = 0x4, scoped, tag = 'scoped memory for tpu_custom_call.1']
    #allocation16 [shape = 'u8[512]{0}', space=vmem, size = 0x400, scoped, tag = 'input window, operand 8, single buffered']
    #allocation17 [shape = 'u8[1024]{0}', space=vmem, size = 0x400, scoped, tag = 'output window, operand 0, single buffered']
    %14 = vsyncpa [#allocation3], 0
    %15 = vsyncpa [#allocation6], 0
    %16 = vsyncpa [#allocation9], 0
    %17 = vsyncpa [#allocation12], 0
    %18 = vsyncpa [#allocation15], 0
    %19 = vsyncpa [#allocation4], 0
    // Predicated region
    $region2: #{tpu_custom_call.1} parent=1 // pred_check
      _
    $region3: #{tpu_custom_call.1} parent=1 // pred_check_branch
      %21 = sbr.rel (0) target = $region5
    $region4: #{tpu_custom_call.1} parent=1 // pred_region
      %s23 = ssub.s32 32, 32
      %24 = vsyncadd [#allocation3], %s23
      %s26 = sshll.u32 [#allocation2], 4
      %s27 = int_to_ptr.vmem [resolvable:$true] %s26
      %29 = dma.hbm_to_vmem [thread:$0]  %s0, 32, %s27, [#allocation3]
    $region5: #{tpu_custom_call.1} parent=1 // pred_fallthru
      _
    // Predicated region
    $region6: #{tpu_custom_call.1} parent=1 // pred_check
      _
    $region7: #{tpu_custom_call.1} parent=1 // pred_check_branch
      %31 = sbr.rel (0) target = $region9
    $region8: #{tpu_custom_call.1} parent=1 // pred_region
      %s33 = ssub.s32 256, 256
      %34 = vsyncadd [#allocation6], %s33
      %s35 = sshll.u32 [#allocation5], 4
      %s36 = int_to_ptr.vmem [resolvable:$true] %s35
      %41 = dma.hbm_to_vmem [thread:$0]  %s1, 256, %s36, [#allocation6], 128, 128, 8
    $region9: #{tpu_custom_call.1} parent=1 // pred_fallthru
      _
    // Predicated region
    $region10: #{tpu_custom_call.1} parent=1 // pred_check
      _
    $region11: #{tpu_custom_call.1} parent=1 // pred_check_branch
      %43 = sbr.rel (0) target = $region13
    $region12: #{tpu_custom_call.1} parent=1 // pred_region
      %s45 = ssub.s32 16, 16
      %46 = vsyncadd [#allocation6], %s45
      %s48 = sshll.u32 [#allocation7], 4
      %s49 = int_to_ptr.vmem [resolvable:$true] %s48
      %51 = dma.hbm_to_vmem [thread:$0]  %s2, 16, %s49, [#allocation6]
    $region13: #{tpu_custom_call.1} parent=1 // pred_fallthru
      _
    // Predicated region
    $region14: #{tpu_custom_call.1} parent=1 // pred_check
      _
    $region15: #{tpu_custom_call.1} parent=1 // pred_check_branch
      %53 = sbr.rel (0) target = $region17
    $region16: #{tpu_custom_call.1} parent=1 // pred_region
      %s55 = ssub.s32 2048, 2048
      %56 = vsyncadd [#allocation9], %s55
      %s57 = sshll.u32 [#allocation8], 4
      %s58 = int_to_ptr.vmem [resolvable:$true] %s57
      %63 = dma.hbm_to_vmem [thread:$0]  %s3, 2048, %s58, [#allocation9], 128, 128, 8
    $region17: #{tpu_custom_call.1} parent=1 // pred_fallthru
      _
    // Predicated region
    $region18: #{tpu_custom_call.1} parent=1 // pred_check
      _
    $region19: #{tpu_custom_call.1} parent=1 // pred_check_branch
      %65 = sbr.rel (0) target = $region21
    $region20: #{tpu_custom_call.1} parent=1 // pred_region
      %s67 = ssub.s32 16, 16
      %68 = vsyncadd [#allocation9], %s67
      %s70 = sshll.u32 [#allocation10], 4
      %s71 = int_to_ptr.vmem [resolvable:$true] %s70
      %73 = dma.hbm_to_vmem [thread:$0]  %s4, 16, %s71, [#allocation9]
    $region21: #{tpu_custom_call.1} parent=1 // pred_fallthru
      _
    // Predicated region
    $region22: #{tpu_custom_call.1} parent=1 // pred_check
      _
    $region23: #{tpu_custom_call.1} parent=1 // pred_check_branch
      %75 = sbr.rel (0) target = $region25
    $region24: #{tpu_custom_call.1} parent=1 // pred_region
      %s77 = ssub.s32 2048, 2048
      %78 = vsyncadd [#allocation12], %s77
      %s79 = sshll.u32 [#allocation11], 4
      %s80 = int_to_ptr.vmem [resolvable:$true] %s79
      %85 = dma.hbm_to_vmem [thread:$0]  %s5, 2048, %s80, [#allocation12], 128, 128, 8
    $region25: #{tpu_custom_call.1} parent=1 // pred_fallthru
      _
    // Predicated region
    $region26: #{tpu_custom_call.1} parent=1 // pred_check
      _
    $region27: #{tpu_custom_call.1} parent=1 // pred_check_branch
      %87 = sbr.rel (0) target = $region29
    $region28: #{tpu_custom_call.1} parent=1 // pred_region
      %s89 = ssub.s32 16, 16
      %90 = vsyncadd [#allocation12], %s89
      %s92 = sshll.u32 [#allocation13], 4
      %s93 = int_to_ptr.vmem [resolvable:$true] %s92
      %95 = dma.hbm_to_vmem [thread:$0]  %s6, 16, %s93, [#allocation12]
    $region29: #{tpu_custom_call.1} parent=1 // pred_fallthru
      _
    // Predicated region
    $region30: #{tpu_custom_call.1} parent=1 // pred_check
      _
    $region31: #{tpu_custom_call.1} parent=1 // pred_check_branch
      %97 = sbr.rel (0) target = $region33
    $region32: #{tpu_custom_call.1} parent=1 // pred_region
      %s99 = ssub.s32 2048, 2048
      %100 = vsyncadd [#allocation15], %s99
      %s101 = sshll.u32 [#allocation14], 4
      %s102 = int_to_ptr.vmem [resolvable:$true] %s101
      %107 = dma.hbm_to_vmem [thread:$0]  %s7, 2048, %s102, [#allocation15], 128, 128, 8
    $region33: #{tpu_custom_call.1} parent=1 // pred_fallthru
      _
    // Predicated region
    $region34: #{tpu_custom_call.1} parent=1 // pred_check
      _
    $region35: #{tpu_custom_call.1} parent=1 // pred_check_branch
      %109 = sbr.rel (0) target = $region37
    $region36: #{tpu_custom_call.1} parent=1 // pred_region
      %s111 = ssub.s32 16, 16
      %112 = vsyncadd [#allocation15], %s111
      %s114 = sshll.u32 [#allocation16], 4
      %s115 = int_to_ptr.vmem [resolvable:$true] %s114
      %117 = dma.hbm_to_vmem [thread:$0]  %s8, 16, %s115, [#allocation15]
    $region37: #{tpu_custom_call.1} parent=1 // pred_fallthru
      _
    // Predicated region
    $region38: #{tpu_custom_call.1} parent=1 // pred_check
      _
    $region39: #{tpu_custom_call.1} parent=1 // pred_check_branch
      %119 = sbr.rel (0) target = $region41
    $region40: #{tpu_custom_call.1} parent=1 // pred_region
      %120 = dma.done [#allocation3], 32
    $region41: #{tpu_custom_call.1} parent=1 // pred_fallthru
      _
    // Predicated region
    $region42: #{tpu_custom_call.1} parent=1 // pred_check
      _
    $region43: #{tpu_custom_call.1} parent=1 // pred_check_branch
      %122 = sbr.rel (0) target = $region45
    $region44: #{tpu_custom_call.1} parent=1 // pred_region
      %123 = dma.done [#allocation6], 256
    $region45: #{tpu_custom_call.1} parent=1 // pred_fallthru
      _
    // Predicated region
    $region46: #{tpu_custom_call.1} parent=1 // pred_check
      _
    $region47: #{tpu_custom_call.1} parent=1 // pred_check_branch
      %125 = sbr.rel (0) target = $region49
    $region48: #{tpu_custom_call.1} parent=1 // pred_region
      %126 = dma.done [#allocation6], 16
    $region49: #{tpu_custom_call.1} parent=1 // pred_fallthru
      _
    // Predicated region
    $region50: #{tpu_custom_call.1} parent=1 // pred_check
      _
    $region51: #{tpu_custom_call.1} parent=1 // pred_check_branch
      %128 = sbr.rel (0) target = $region53
    $region52: #{tpu_custom_call.1} parent=1 // pred_region
      %129 = dma.done [#allocation9], 2048
    $region53: #{tpu_custom_call.1} parent=1 // pred_fallthru
      _
    // Predicated region
    $region54: #{tpu_custom_call.1} parent=1 // pred_check
      _
    $region55: #{tpu_custom_call.1} parent=1 // pred_check_branch
      %131 = sbr.rel (0) target = $region57
    $region56: #{tpu_custom_call.1} parent=1 // pred_region
      %132 = dma.done [#allocation9], 16
    $region57: #{tpu_custom_call.1} parent=1 // pred_fallthru
      _
    // Predicated region
    $region58: #{tpu_custom_call.1} parent=1 // pred_check
      _
    $region59: #{tpu_custom_call.1} parent=1 // pred_check_branch
      %134 = sbr.rel (0) target = $region61
    $region60: #{tpu_custom_call.1} parent=1 // pred_region
      %135 = dma.done [#allocation12], 2048
    $region61: #{tpu_custom_call.1} parent=1 // pred_fallthru
      _
    // Predicated region
    $region62: #{tpu_custom_call.1} parent=1 // pred_check
      _
    $region63: #{tpu_custom_call.1} parent=1 // pred_check_branch
      %137 = sbr.rel (0) target = $region65
    $region64: #{tpu_custom_call.1} parent=1 // pred_region
      %138 = dma.done [#allocation12], 16
    $region65: #{tpu_custom_call.1} parent=1 // pred_fallthru
      _
    // Predicated region
    $region66: #{tpu_custom_call.1} parent=1 // pred_check
      _
    $region67: #{tpu_custom_call.1} parent=1 // pred_check_branch
      %140 = sbr.rel (0) target = $region69
    $region68: #{tpu_custom_call.1} parent=1 // pred_region
      %141 = dma.done [#allocation15], 2048
    $region69: #{tpu_custom_call.1} parent=1 // pred_fallthru
      _
    // Predicated region
    $region70: #{tpu_custom_call.1} parent=1 // pred_check
      _
    $region71: #{tpu_custom_call.1} parent=1 // pred_check_branch
      %143 = sbr.rel (0) target = $region73
    $region72: #{tpu_custom_call.1} parent=1 // pred_region
      %144 = dma.done [#allocation15], 16
    $region73: #{tpu_custom_call.1} parent=1 // pred_fallthru
      _
    %v145 = vld [vmem:[#allocation2] sm:$0x3]
    %v146 = vld [vmem:[#allocation5] sm:$0xff]
    %v147 = vld [vmem:[#allocation5 + $0x8] sm:$0xff]
    %v148 = vld [vmem:[#allocation7] sm:$0x1]
    %v150 = vlaneseq
    %v151 = vshrl.u32 %v150, 7
    %v152 = vsub.s32 0, %v151
    %v153 = vrot.slane %v148, %v152
    %vm155 = vcmask 130048
    %v157 = vsel %vm155, %v145, 0
    %159 = vmatprep.subr.mxu0 0.0
    %160 = vmatpush1.msra.mxu0 %v146
    %161 = vmatprep.subr.mxu0 0.0
    %162 = vmatpush1.msra.mxu0 %v147
    %163 = vmatprep.subr.mxu0 0.0
    %164 = vmatpush1.msra.mxu0 0.0
    %165 = vmatprep.subr.mxu0 0.0
    %166 = vmatpush1.msra.mxu0 0.0
    %167 = vmatprep.subr.mxu0 0.0
    %168 = vmatpush1.msra.mxu0 0.0
    %169 = vmatprep.subr.mxu0 0.0
    %170 = vmatpush1.msra.mxu0 0.0
    %171 = vmatprep.subr.mxu0 0.0
    %172 = vmatpush1.msra.mxu0 0.0
    %173 = vmatprep.subr.mxu0 0.0
    %174 = vmatpush1.msra.mxu0 0.0
    %175 = vmatprep.subr.mxu0 0.0
    %176 = vmatpush1.msra.mxu0 0.0
    %177 = vmatprep.subr.mxu0 0.0
    %178 = vmatpush1.msra.mxu0 0.0
    %179 = vmatprep.subr.mxu0 0.0
    %180 = vmatpush1.msra.mxu0 0.0
    %181 = vmatprep.subr.mxu0 0.0
    %182 = vmatpush1.msra.mxu0 0.0
    %183 = vmatprep.subr.mxu0 0.0
    %184 = vmatpush1.msra.mxu0 0.0
    %185 = vmatprep.subr.mxu0 0.0
    %186 = vmatpush1.msra.mxu0 0.0
    %187 = vmatprep.subr.mxu0 0.0
    %188 = vmatpush1.msra.mxu0 0.0
    %189 = vmatprep.subr.mxu0 0.0
    %190 = vmatpush1.msra.mxu0 0.0
    %191 = vmatprep.subr.mxu0 0.0
    %192 = vmatpush1.msra.mxu0 0.0
    %193 = vmatprep.subr.mxu0 0.0
    %194 = vmatpush1.msra.mxu0 0.0
    %195 = vmatprep.subr.mxu0 0.0
    %196 = vmatpush1.msra.mxu0 0.0
    %197 = vmatprep.subr.mxu0 0.0
    %198 = vmatpush1.msra.mxu0 0.0
    %199 = vmatprep.subr.mxu0 0.0
    %200 = vmatpush1.msra.mxu0 0.0
    %201 = vmatprep.subr.mxu0 0.0
    %202 = vmatpush1.msra.mxu0 0.0
    %203 = vmatprep.subr.mxu0 0.0
    %204 = vmatpush1.msra.mxu0 0.0
    %205 = vmatprep.subr.mxu0 0.0
    %206 = vmatpush1.msra.mxu0 0.0
    %207 = vmatprep.subr.mxu0 0.0
    %208 = vmatpush1.msra.mxu0 0.0
    %209 = vmatprep.subr.mxu0 0.0
    %210 = vmatpush1.msra.mxu0 0.0
    %211 = vmatprep.subr.mxu0 0.0
    %212 = vmatpush1.msra.mxu0 0.0
    %213 = vmatprep.subr.mxu0 0.0
    %214 = vmatpush1.msra.mxu0 0.0
    %215 = vmatprep.subr.mxu0 0.0
    %216 = vmatpush1.msra.mxu0 0.0
    %217 = vmatprep.subr.mxu0 0.0
    %218 = vmatpush1.msra.mxu0 0.0
    %219 = vmatprep.subr.mxu0 0.0
    %220 = vmatpush1.msra.mxu0 0.0
    %221 = vmatprep.subr.mxu0 0.0
    %222 = vmatpush1.msra.mxu0 0.0
    %223 = vmatprep.mubr.f32.mxu0 0.0
    %224 = vmatmul.mubr.f32.gmra.mrb[0].mxu0 %v157
    %v225 = vpop.f32.mrb[0].mxu0
    %v226 = vadd.f32 %v153, %v225
    %v227 = vpop.f32.mrb[0].mxu0
    %228 = vdwg.mxu0
    %vm229 = vcmp.gt.f32.partialorder %v226, 0.0
    %v230 = vmul.f32 %v226, 0.2
    %v231 = vsel %vm229, %v226, %v230
    %v232 = vld [vmem:[#allocation8] sm:$0xff]
    %v233 = vld [vmem:[#allocation8 + $0x8] sm:$0xff]
    %v234 = vld [vmem:[#allocation8 + $0x10] sm:$0xff]
    %v235 = vld [vmem:[#allocation8 + $0x18] sm:$0xff]
    %v236 = vld [vmem:[#allocation8 + $0x20] sm:$0xff]
    %v237 = vld [vmem:[#allocation8 + $0x28] sm:$0xff]
    %v238 = vld [vmem:[#allocation8 + $0x30] sm:$0xff]
    %v239 = vld [vmem:[#allocation8 + $0x38] sm:$0xff]
    %v240 = vld [vmem:[#allocation8 + $0x40] sm:$0xff]
    %v241 = vld [vmem:[#allocation8 + $0x48] sm:$0xff]
    %v242 = vld [vmem:[#allocation8 + $0x50] sm:$0xff]
    %v243 = vld [vmem:[#allocation8 + $0x58] sm:$0xff]
    %v244 = vld [vmem:[#allocation8 + $0x60] sm:$0xff]
    %v245 = vld [vmem:[#allocation8 + $0x68] sm:$0xff]
    %v246 = vld [vmem:[#allocation8 + $0x70] sm:$0xff]
    %v247 = vld [vmem:[#allocation8 + $0x78] sm:$0xff]
    %v248 = vld [vmem:[#allocation10] sm:$0x1]
    %v250 = vlaneseq
    %v251 = vshrl.u32 %v250, 7
    %v252 = vsub.s32 0, %v251
    %v253 = vrot.slane %v248, %v252
    %255 = vmatprep.subr.mxu0 0.0
    %256 = vmatpush1.msra.mxu0 %v232
    %257 = vmatprep.subr.mxu0 0.0
    %258 = vmatpush1.msra.mxu0 %v233
    %259 = vmatprep.subr.mxu0 0.0
    %260 = vmatpush1.msra.mxu0 %v234
    %261 = vmatprep.subr.mxu0 0.0
    %262 = vmatpush1.msra.mxu0 %v235
    %263 = vmatprep.subr.mxu0 0.0
    %264 = vmatpush1.msra.mxu0 %v236
    %265 = vmatprep.subr.mxu0 0.0
    %266 = vmatpush1.msra.mxu0 %v237
    %267 = vmatprep.subr.mxu0 0.0
    %268 = vmatpush1.msra.mxu0 %v238
    %269 = vmatprep.subr.mxu0 0.0
    %270 = vmatpush1.msra.mxu0 %v239
    %271 = vmatprep.subr.mxu0 0.0
    %272 = vmatpush1.msra.mxu0 %v240
    %273 = vmatprep.subr.mxu0 0.0
    %274 = vmatpush1.msra.mxu0 %v241
    %275 = vmatprep.subr.mxu0 0.0
    %276 = vmatpush1.msra.mxu0 %v242
    %277 = vmatprep.subr.mxu0 0.0
    %278 = vmatpush1.msra.mxu0 %v243
    %279 = vmatprep.subr.mxu0 0.0
    %280 = vmatpush1.msra.mxu0 %v244
    %281 = vmatprep.subr.mxu0 0.0
    %282 = vmatpush1.msra.mxu0 %v245
    %283 = vmatprep.subr.mxu0 0.0
    %284 = vmatpush1.msra.mxu0 %v246
    %285 = vmatprep.subr.mxu0 0.0
    %286 = vmatpush1.msra.mxu0 %v247
    %287 = vmatprep.subr.mxu0 0.0
    %288 = vmatpush1.msra.mxu0 0.0
    %289 = vmatprep.subr.mxu0 0.0
    %290 = vmatpush1.msra.mxu0 0.0
    %291 = vmatprep.subr.mxu0 0.0
    %292 = vmatpush1.msra.mxu0 0.0
    %293 = vmatprep.subr.mxu0 0.0
    %294 = vmatpush1.msra.mxu0 0.0
    %295 = vmatprep.subr.mxu0 0.0
    %296 = vmatpush1.msra.mxu0 0.0
    %297 = vmatprep.subr.mxu0 0.0
    %298 = vmatpush1.msra.mxu0 0.0
    %299 = vmatprep.subr.mxu0 0.0
    %300 = vmatpush1.msra.mxu0 0.0
    %301 = vmatprep.subr.mxu0 0.0
    %302 = vmatpush1.msra.mxu0 0.0
    %303 = vmatprep.subr.mxu0 0.0
    %304 = vmatpush1.msra.mxu0 0.0
    %305 = vmatprep.subr.mxu0 0.0
    %306 = vmatpush1.msra.mxu0 0.0
    %307 = vmatprep.subr.mxu0 0.0
    %308 = vmatpush1.msra.mxu0 0.0
    %309 = vmatprep.subr.mxu0 0.0
    %310 = vmatpush1.msra.mxu0 0.0
    %311 = vmatprep.subr.mxu0 0.0
    %312 = vmatpush1.msra.mxu0 0.0
    %313 = vmatprep.subr.mxu0 0.0
    %314 = vmatpush1.msra.mxu0 0.0
    %315 = vmatprep.subr.mxu0 0.0
    %316 = vmatpush1.msra.mxu0 0.0
    %317 = vmatprep.subr.mxu0 0.0
    %318 = vmatpush1.msra.mxu0 0.0
    %319 = vmatprep.mubr.f32.mxu0 0.0
    %320 = vmatmul.mubr.f32.gmra.mrb[0].mxu0 %v231
    %v321 = vpop.f32.mrb[0].mxu0
    %v322 = vadd.f32 %v253, %v321
    %v323 = vpop.f32.mrb[0].mxu0
    %324 = vdwg.mxu0
    %vm325 = vcmp.gt.f32.partialorder %v322, 0.0
    %v326 = vmul.f32 %v322, 0.2
    %v327 = vsel %vm325, %v322, %v326
    %v328 = vld [vmem:[#allocation11] sm:$0xff]
    %v329 = vld [vmem:[#allocation11 + $0x8] sm:$0xff]
    %v330 = vld [vmem:[#allocation11 + $0x10] sm:$0xff]
    %v331 = vld [vmem:[#allocation11 + $0x18] sm:$0xff]
    %v332 = vld [vmem:[#allocation11 + $0x20] sm:$0xff]
    %v333 = vld [vmem:[#allocation11 + $0x28] sm:$0xff]
    %v334 = vld [vmem:[#allocation11 + $0x30] sm:$0xff]
    %v335 = vld [vmem:[#allocation11 + $0x38] sm:$0xff]
    %v336 = vld [vmem:[#allocation11 + $0x40] sm:$0xff]
    %v337 = vld [vmem:[#allocation11 + $0x48] sm:$0xff]
    %v338 = vld [vmem:[#allocation11 + $0x50] sm:$0xff]
    %v339 = vld [vmem:[#allocation11 + $0x58] sm:$0xff]
    %v340 = vld [vmem:[#allocation11 + $0x60] sm:$0xff]
    %v341 = vld [vmem:[#allocation11 + $0x68] sm:$0xff]
    %v342 = vld [vmem:[#allocation11 + $0x70] sm:$0xff]
    %v343 = vld [vmem:[#allocation11 + $0x78] sm:$0xff]
    %v344 = vld [vmem:[#allocation13] sm:$0x1]
    %v346 = vlaneseq
    %v347 = vshrl.u32 %v346, 7
    %v348 = vsub.s32 0, %v347
    %v349 = vrot.slane %v344, %v348
    %351 = vmatprep.subr.mxu0 0.0
    %352 = vmatpush1.msra.mxu0 %v328
    %353 = vmatprep.subr.mxu0 0.0
    %354 = vmatpush1.msra.mxu0 %v329
    %355 = vmatprep.subr.mxu0 0.0
    %356 = vmatpush1.msra.mxu0 %v330
    %357 = vmatprep.subr.mxu0 0.0
    %358 = vmatpush1.msra.mxu0 %v331
    %359 = vmatprep.subr.mxu0 0.0
    %360 = vmatpush1.msra.mxu0 %v332
    %361 = vmatprep.subr.mxu0 0.0
    %362 = vmatpush1.msra.mxu0 %v333
    %363 = vmatprep.subr.mxu0 0.0
    %364 = vmatpush1.msra.mxu0 %v334
    %365 = vmatprep.subr.mxu0 0.0
    %366 = vmatpush1.msra.mxu0 %v335
    %367 = vmatprep.subr.mxu0 0.0
    %368 = vmatpush1.msra.mxu0 %v336
    %369 = vmatprep.subr.mxu0 0.0
    %370 = vmatpush1.msra.mxu0 %v337
    %371 = vmatprep.subr.mxu0 0.0
    %372 = vmatpush1.msra.mxu0 %v338
    %373 = vmatprep.subr.mxu0 0.0
    %374 = vmatpush1.msra.mxu0 %v339
    %375 = vmatprep.subr.mxu0 0.0
    %376 = vmatpush1.msra.mxu0 %v340
    %377 = vmatprep.subr.mxu0 0.0
    %378 = vmatpush1.msra.mxu0 %v341
    %379 = vmatprep.subr.mxu0 0.0
    %380 = vmatpush1.msra.mxu0 %v342
    %381 = vmatprep.subr.mxu0 0.0
    %382 = vmatpush1.msra.mxu0 %v343
    %383 = vmatprep.subr.mxu0 0.0
    %384 = vmatpush1.msra.mxu0 0.0
    %385 = vmatprep.subr.mxu0 0.0
    %386 = vmatpush1.msra.mxu0 0.0
    %387 = vmatprep.subr.mxu0 0.0
    %388 = vmatpush1.msra.mxu0 0.0
    %389 = vmatprep.subr.mxu0 0.0
    %390 = vmatpush1.msra.mxu0 0.0
    %391 = vmatprep.subr.mxu0 0.0
    %392 = vmatpush1.msra.mxu0 0.0
    %393 = vmatprep.subr.mxu0 0.0
    %394 = vmatpush1.msra.mxu0 0.0
    %395 = vmatprep.subr.mxu0 0.0
    %396 = vmatpush1.msra.mxu0 0.0
    %397 = vmatprep.subr.mxu0 0.0
    %398 = vmatpush1.msra.mxu0 0.0
    %399 = vmatprep.subr.mxu0 0.0
    %400 = vmatpush1.msra.mxu0 0.0
    %401 = vmatprep.subr.mxu0 0.0
    %402 = vmatpush1.msra.mxu0 0.0
    %403 = vmatprep.subr.mxu0 0.0
    %404 = vmatpush1.msra.mxu0 0.0
    %405 = vmatprep.subr.mxu0 0.0
    %406 = vmatpush1.msra.mxu0 0.0
    %407 = vmatprep.subr.mxu0 0.0
    %408 = vmatpush1.msra.mxu0 0.0
    %409 = vmatprep.subr.mxu0 0.0
    %410 = vmatpush1.msra.mxu0 0.0
    %411 = vmatprep.subr.mxu0 0.0
    %412 = vmatpush1.msra.mxu0 0.0
    %413 = vmatprep.subr.mxu0 0.0
    %414 = vmatpush1.msra.mxu0 0.0
    %415 = vmatprep.mubr.f32.mxu0 0.0
    %416 = vmatmul.mubr.f32.gmra.mrb[0].mxu0 %v327
    %v417 = vpop.f32.mrb[0].mxu0
    %v418 = vadd.f32 %v349, %v417
    %v419 = vpop.f32.mrb[0].mxu0
    %420 = vdwg.mxu0
    %vm421 = vcmp.gt.f32.partialorder %v418, 0.0
    %v422 = vmul.f32 %v418, 0.2
    %v423 = vsel %vm421, %v418, %v422
    %v424 = vld [vmem:[#allocation14] sm:$0xff]
    %v425 = vld [vmem:[#allocation14 + $0x8] sm:$0xff]
    %v426 = vld [vmem:[#allocation14 + $0x10] sm:$0xff]
    %v427 = vld [vmem:[#allocation14 + $0x18] sm:$0xff]
    %v428 = vld [vmem:[#allocation14 + $0x20] sm:$0xff]
    %v429 = vld [vmem:[#allocation14 + $0x28] sm:$0xff]
    %v430 = vld [vmem:[#allocation14 + $0x30] sm:$0xff]
    %v431 = vld [vmem:[#allocation14 + $0x38] sm:$0xff]
    %v432 = vld [vmem:[#allocation14 + $0x40] sm:$0xff]
    %v433 = vld [vmem:[#allocation14 + $0x48] sm:$0xff]
    %v434 = vld [vmem:[#allocation14 + $0x50] sm:$0xff]
    %v435 = vld [vmem:[#allocation14 + $0x58] sm:$0xff]
    %v436 = vld [vmem:[#allocation14 + $0x60] sm:$0xff]
    %v437 = vld [vmem:[#allocation14 + $0x68] sm:$0xff]
    %v438 = vld [vmem:[#allocation14 + $0x70] sm:$0xff]
    %v439 = vld [vmem:[#allocation14 + $0x78] sm:$0xff]
    %v440 = vld [vmem:[#allocation16] sm:$0x1]
    %v442 = vlaneseq
    %v443 = vshrl.u32 %v442, 7
    %v444 = vsub.s32 0, %v443
    %v445 = vrot.slane %v440, %v444
    %447 = vmatprep.subr.mxu0 0.0
    %448 = vmatpush1.msra.mxu0 %v424
    %449 = vmatprep.subr.mxu0 0.0
    %450 = vmatpush1.msra.mxu0 %v425
    %451 = vmatprep.subr.mxu0 0.0
    %452 = vmatpush1.msra.mxu0 %v426
    %453 = vmatprep.subr.mxu0 0.0
    %454 = vmatpush1.msra.mxu0 %v427
    %455 = vmatprep.subr.mxu0 0.0
    %456 = vmatpush1.msra.mxu0 %v428
    %457 = vmatprep.subr.mxu0 0.0
    %458 = vmatpush1.msra.mxu0 %v429
    %459 = vmatprep.subr.mxu0 0.0
    %460 = vmatpush1.msra.mxu0 %v430
    %461 = vmatprep.subr.mxu0 0.0
    %462 = vmatpush1.msra.mxu0 %v431
    %463 = vmatprep.subr.mxu0 0.0
    %464 = vmatpush1.msra.mxu0 %v432
    %465 = vmatprep.subr.mxu0 0.0
    %466 = vmatpush1.msra.mxu0 %v433
    %467 = vmatprep.subr.mxu0 0.0
    %468 = vmatpush1.msra.mxu0 %v434
    %469 = vmatprep.subr.mxu0 0.0
    %470 = vmatpush1.msra.mxu0 %v435
    %471 = vmatprep.subr.mxu0 0.0
    %472 = vmatpush1.msra.mxu0 %v436
    %473 = vmatprep.subr.mxu0 0.0
    %474 = vmatpush1.msra.mxu0 %v437
    %475 = vmatprep.subr.mxu0 0.0
    %476 = vmatpush1.msra.mxu0 %v438
    %477 = vmatprep.subr.mxu0 0.0
    %478 = vmatpush1.msra.mxu0 %v439
    %479 = vmatprep.subr.mxu0 0.0
    %480 = vmatpush1.msra.mxu0 0.0
    %481 = vmatprep.subr.mxu0 0.0
    %482 = vmatpush1.msra.mxu0 0.0
    %483 = vmatprep.subr.mxu0 0.0
    %484 = vmatpush1.msra.mxu0 0.0
    %485 = vmatprep.subr.mxu0 0.0
    %486 = vmatpush1.msra.mxu0 0.0
    %487 = vmatprep.subr.mxu0 0.0
    %488 = vmatpush1.msra.mxu0 0.0
    %489 = vmatprep.subr.mxu0 0.0
    %490 = vmatpush1.msra.mxu0 0.0
    %491 = vmatprep.subr.mxu0 0.0
    %492 = vmatpush1.msra.mxu0 0.0
    %493 = vmatprep.subr.mxu0 0.0
    %494 = vmatpush1.msra.mxu0 0.0
    %495 = vmatprep.subr.mxu0 0.0
    %496 = vmatpush1.msra.mxu0 0.0
    %497 = vmatprep.subr.mxu0 0.0
    %498 = vmatpush1.msra.mxu0 0.0
    %499 = vmatprep.subr.mxu0 0.0
    %500 = vmatpush1.msra.mxu0 0.0
    %501 = vmatprep.subr.mxu0 0.0
    %502 = vmatpush1.msra.mxu0 0.0
    %503 = vmatprep.subr.mxu0 0.0
    %504 = vmatpush1.msra.mxu0 0.0
    %505 = vmatprep.subr.mxu0 0.0
    %506 = vmatpush1.msra.mxu0 0.0
    %507 = vmatprep.subr.mxu0 0.0
    %508 = vmatpush1.msra.mxu0 0.0
    %509 = vmatprep.subr.mxu0 0.0
    %510 = vmatpush1.msra.mxu0 0.0
    %511 = vmatprep.mubr.f32.mxu0 0.0
    %512 = vmatmul.mubr.f32.gmra.mrb[0].mxu0 %v423
    %v513 = vpop.f32.mrb[0].mxu0
    %v514 = vadd.f32 %v445, %v513
    %v515 = vpop.f32.mrb[0].mxu0
    %516 = vdwg.mxu0
    %v517 = vadd.f32 %v145, %v514
    %vm518 = vcmask 123904
    %519 = vst.msk [vmem:[#allocation17] sm:$0x3] %vm518, %v517
    // Predicated region
    $region74: #{tpu_custom_call.1} parent=1 // pred_check
      _
    $region75: #{tpu_custom_call.1} parent=1 // pred_check_branch
      %521 = sbr.rel (0) target = $region77
    $region76: #{tpu_custom_call.1} parent=1 // pred_region
      %s523 = ssub.s32 32, 32
      %524 = vsyncadd [#allocation4], %s523
      %s526 = sshll.u32 [#allocation17], 4
      %s527 = int_to_ptr.vmem [resolvable:$true] %s526
      %529 = dma.vmem_to_hbm [thread:$0]  %s527, 32, %s9, [#allocation4]
    $region77: #{tpu_custom_call.1} parent=1 // pred_fallthru
      _
    // Predicated region
    $region78: #{tpu_custom_call.1} parent=1 // pred_check
      _
    $region79: #{tpu_custom_call.1} parent=1 // pred_check_branch
      %531 = sbr.rel (0) target = $region81
    $region80: #{tpu_custom_call.1} parent=1 // pred_region
      %532 = dma.done [#allocation4], 32
    $region81: #{tpu_custom_call.1} parent=1 // pred_fallthru
      _
    %533 = vsyncpa [#allocation3], 1
    %534 = vsyncpa [#allocation6], 1
    %535 = vsyncpa [#allocation9], 1
    %536 = vsyncpa [#allocation12], 1
    %537 = vsyncpa [#allocation15], 1
    %538 = vsyncpa [#allocation4], 1

// kernel: tpu_custom_call.1
$region0: #{tpu_custom_call.1}
  #allocation0 [shape = 'u32[]', space=smem, size = 0x4, offset = 0x4, fixed_abs, tag = 'smem constant byte address 0x4 - core index']
  #allocation1 [shape = 'u32[144,128]{1,0:T(1,128)}', space=vmem, size = 0x12000, scoped, tag = 'internal scratch']
  %s0 = inlined_call_operand.hbm [shape: f32[2,16], index: 0, kind: input, shape index: {}]
  %s1 = inlined_call_operand.hbm [shape: f32[16,128], index: 1, kind: input, shape index: {}]
  %s2 = inlined_call_operand.hbm [shape: f32[1,128], index: 2, kind: input, shape index: {}]
  %s3 = inlined_call_operand.hbm [shape: f32[128,128], index: 3, kind: input, shape index: {}]
  %s4 = inlined_call_operand.hbm [shape: f32[1,128], index: 4, kind: input, shape index: {}]
  %s5 = inlined_call_operand.hbm [shape: f32[128,128], index: 5, kind: input, shape index: {}]
  %s6 = inlined_call_operand.hbm [shape: f32[1,128], index: 6, kind: input, shape index: {}]
  %s7 = inlined_call_operand.hbm [shape: f32[128,16], index: 7, kind: input, shape index: {}]
  %s8 = inlined_call_operand.hbm [shape: f32[1,16], index: 8, kind: input, shape index: {}]
  %s9 = inlined_call_operand.hbm [shape: f32[2,16], index: 9, kind: output, shape index: {}]
  %s10 = sld [smem:[#allocation0]]
  $region82: #{tpu_custom_call.1} parent=0
    _
  %s12 = ssub.s32 1, %s10
  %s13 = scalar_select 0, %s12, %s10
  $region1: #{tpu_custom_call.1} parent=0
    #allocation2 [shape = 'u8[1024]{0}', space=vmem, size = 0x400, scoped, tag = 'input window, operand 0, single buffered']
    #allocation3 [shape = 's32[1]{0}', space=sflag, size = 0x4, scoped, tag = 'scoped memory for tpu_custom_call.1']
    #allocation4 [shape = 's32[1]{0}', space=sflag, size = 0x4, scoped, tag = 'scoped memory for tpu_custom_call.1']
    #allocation5 [shape = 'u8[8192]{0}', space=vmem, size = 0x2000, scoped, tag = 'input window, operand 1, single buffered']
    #allocation6 [shape = 's32[1]{0}', space=sflag, size = 0x4, scoped, tag = 'scoped memory for tpu_custom_call.1']
    #allocation7 [shape = 'u8[512]{0}', space=vmem, size = 0x400, scoped, tag = 'input window, operand 2, single buffered']
    #allocation8 [shape = 'u8[65536]{0}', space=vmem, size = 0x10000, scoped, tag = 'input window, operand 3, single buffered']
    #allocation9 [shape = 's32[1]{0}', space=sflag, size = 0x4, scoped, tag = 'scoped memory for tpu_custom_call.1']
    #allocation10 [shape = 'u8[512]{0}', space=vmem, size = 0x400, scoped, tag = 'input window, operand 4, single buffered']
    #allocation11 [shape = 'u8[65536]{0}', space=vmem, size = 0x10000, scoped, tag = 'input window, operand 5, single buffered']
    #allocation12 [shape = 's32[1]{0}', space=sflag, size = 0x4, scoped, tag = 'scoped memory for tpu_custom_call.1']
    #allocation13 [shape = 'u8[512]{0}', space=vmem, size = 0x400, scoped, tag = 'input window, operand 6, single buffered']
    #allocation14 [shape = 'u8[65536]{0}', space=vmem, size = 0x10000, scoped, tag = 'input window, operand 7, single buffered']
    #allocation15 [shape = 's32[1]{0}', space=sflag, size = 0x4, scoped, tag = 'scoped memory for tpu_custom_call.1']
    #allocation16 [shape = 'u8[512]{0}', space=vmem, size = 0x400, scoped, tag = 'input window, operand 8, single buffered']
    #allocation17 [shape = 'u8[1024]{0}', space=vmem, size = 0x400, scoped, tag = 'output window, operand 0, single buffered']
    %14 = vsyncpa [#allocation3], 0
    %15 = vsyncpa [#allocation6], 0
    %16 = vsyncpa [#allocation9], 0
    %17 = vsyncpa [#allocation12], 0
    %18 = vsyncpa [#allocation15], 0
    %19 = vsyncpa [#allocation4], 0
    // Predicated region
    $region2: #{tpu_custom_call.1} parent=1 // pred_check
      _
    $region3: #{tpu_custom_call.1} parent=1 // pred_check_branch
      %21 = sbr.rel (0) target = $region5
    $region4: #{tpu_custom_call.1} parent=1 // pred_region
      %s23 = ssub.s32 32, 32
      %24 = vsyncadd [#allocation3], %s23
      %s26 = sshll.u32 [#allocation2], 4
      %s27 = int_to_ptr.vmem [resolvable:$true] %s26
      %29 = dma.hbm_to_vmem [thread:$0]  %s0, 32, %s27, [#allocation3]
    $region5: #{tpu_custom_call.1} parent=1 // pred_fallthru
      _
    // Predicated region
    $region6: #{tpu_custom_call.1} parent=1 // pred_check
      _
    $region7: #{tpu_custom_call.1} parent=1 // pred_check_branch
      %31 = sbr.rel (0) target = $region9
    $region8: #{tpu_custom_call.1} parent=1 // pred_region
      %s33 = ssub.s32 256, 256
      %34 = vsyncadd [#allocation6], %s33
      %s35 = sshll.u32 [#allocation5], 4
      %s36 = int_to_ptr.vmem [resolvable:$true] %s35
      %41 = dma.hbm_to_vmem [thread:$0]  %s1, 256, %s36, [#allocation6], 128, 128, 8
    $region9: #{tpu_custom_call.1} parent=1 // pred_fallthru
      _
    // Predicated region
    $region10: #{tpu_custom_call.1} parent=1 // pred_check
      _
    $region11: #{tpu_custom_call.1} parent=1 // pred_check_branch
      %43 = sbr.rel (0) target = $region13
    $region12: #{tpu_custom_call.1} parent=1 // pred_region
      %s45 = ssub.s32 16, 16
      %46 = vsyncadd [#allocation6], %s45
      %s48 = sshll.u32 [#allocation7], 4
      %s49 = int_to_ptr.vmem [resolvable:$true] %s48
      %51 = dma.hbm_to_vmem [thread:$0]  %s2, 16, %s49, [#allocation6]
    $region13: #{tpu_custom_call.1} parent=1 // pred_fallthru
      _
    // Predicated region
    $region14: #{tpu_custom_call.1} parent=1 // pred_check
      _
    $region15: #{tpu_custom_call.1} parent=1 // pred_check_branch
      %53 = sbr.rel (0) target = $region17
    $region16: #{tpu_custom_call.1} parent=1 // pred_region
      %s55 = ssub.s32 2048, 2048
      %56 = vsyncadd [#allocation9], %s55
      %s57 = sshll.u32 [#allocation8], 4
      %s58 = int_to_ptr.vmem [resolvable:$true] %s57
      %63 = dma.hbm_to_vmem [thread:$0]  %s3, 2048, %s58, [#allocation9], 128, 128, 8
    $region17: #{tpu_custom_call.1} parent=1 // pred_fallthru
      _
    // Predicated region
    $region18: #{tpu_custom_call.1} parent=1 // pred_check
      _
    $region19: #{tpu_custom_call.1} parent=1 // pred_check_branch
      %65 = sbr.rel (0) target = $region21
    $region20: #{tpu_custom_call.1} parent=1 // pred_region
      %s67 = ssub.s32 16, 16
      %68 = vsyncadd [#allocation9], %s67
      %s70 = sshll.u32 [#allocation10], 4
      %s71 = int_to_ptr.vmem [resolvable:$true] %s70
      %73 = dma.hbm_to_vmem [thread:$0]  %s4, 16, %s71, [#allocation9]
    $region21: #{tpu_custom_call.1} parent=1 // pred_fallthru
      _
    // Predicated region
    $region22: #{tpu_custom_call.1} parent=1 // pred_check
      _
    $region23: #{tpu_custom_call.1} parent=1 // pred_check_branch
      %75 = sbr.rel (0) target = $region25
    $region24: #{tpu_custom_call.1} parent=1 // pred_region
      %s77 = ssub.s32 2048, 2048
      %78 = vsyncadd [#allocation12], %s77
      %s79 = sshll.u32 [#allocation11], 4
      %s80 = int_to_ptr.vmem [resolvable:$true] %s79
      %85 = dma.hbm_to_vmem [thread:$0]  %s5, 2048, %s80, [#allocation12], 128, 128, 8
    $region25: #{tpu_custom_call.1} parent=1 // pred_fallthru
      _
    // Predicated region
    $region26: #{tpu_custom_call.1} parent=1 // pred_check
      _
    $region27: #{tpu_custom_call.1} parent=1 // pred_check_branch
      %87 = sbr.rel (0) target = $region29
    $region28: #{tpu_custom_call.1} parent=1 // pred_region
      %s89 = ssub.s32 16, 16
      %90 = vsyncadd [#allocation12], %s89
      %s92 = sshll.u32 [#allocation13], 4
      %s93 = int_to_ptr.vmem [resolvable:$true] %s92
      %95 = dma.hbm_to_vmem [thread:$0]  %s6, 16, %s93, [#allocation12]
    $region29: #{tpu_custom_call.1} parent=1 // pred_fallthru
      _
    // Predicated region
    $region30: #{tpu_custom_call.1} parent=1 // pred_check
      _
    $region31: #{tpu_custom_call.1} parent=1 // pred_check_branch
      %97 = sbr.rel (0) target = $region33
    $region32: #{tpu_custom_call.1} parent=1 // pred_region
      %s99 = ssub.s32 2048, 2048
      %100 = vsyncadd [#allocation15], %s99
      %s101 = sshll.u32 [#allocation14], 4
      %s102 = int_to_ptr.vmem [resolvable:$true] %s101
      %107 = dma.hbm_to_vmem [thread:$0]  %s7, 2048, %s102, [#allocation15], 128, 128, 8
    $region33: #{tpu_custom_call.1} parent=1 // pred_fallthru
      _
    // Predicated region
    $region34: #{tpu_custom_call.1} parent=1 // pred_check
      _
    $region35: #{tpu_custom_call.1} parent=1 // pred_check_branch
      %109 = sbr.rel (0) target = $region37
    $region36: #{tpu_custom_call.1} parent=1 // pred_region
      %s111 = ssub.s32 16, 16
      %112 = vsyncadd [#allocation15], %s111
      %s114 = sshll.u32 [#allocation16], 4
      %s115 = int_to_ptr.vmem [resolvable:$true] %s114
      %117 = dma.hbm_to_vmem [thread:$0]  %s8, 16, %s115, [#allocation15]
    $region37: #{tpu_custom_call.1} parent=1 // pred_fallthru
      _
    // Predicated region
    $region38: #{tpu_custom_call.1} parent=1 // pred_check
      _
    $region39: #{tpu_custom_call.1} parent=1 // pred_check_branch
      %119 = sbr.rel (0) target = $region41
    $region40: #{tpu_custom_call.1} parent=1 // pred_region
      %120 = dma.done [#allocation3], 32
    $region41: #{tpu_custom_call.1} parent=1 // pred_fallthru
      _
    // Predicated region
    $region42: #{tpu_custom_call.1} parent=1 // pred_check
      _
    $region43: #{tpu_custom_call.1} parent=1 // pred_check_branch
      %122 = sbr.rel (0) target = $region45
    $region44: #{tpu_custom_call.1} parent=1 // pred_region
      %123 = dma.done [#allocation6], 256
    $region45: #{tpu_custom_call.1} parent=1 // pred_fallthru
      _
    // Predicated region
    $region46: #{tpu_custom_call.1} parent=1 // pred_check
      _
    $region47: #{tpu_custom_call.1} parent=1 // pred_check_branch
      %125 = sbr.rel (0) target = $region49
    $region48: #{tpu_custom_call.1} parent=1 // pred_region
      %126 = dma.done [#allocation6], 16
    $region49: #{tpu_custom_call.1} parent=1 // pred_fallthru
      _
    // Predicated region
    $region50: #{tpu_custom_call.1} parent=1 // pred_check
      _
    $region51: #{tpu_custom_call.1} parent=1 // pred_check_branch
      %128 = sbr.rel (0) target = $region53
    $region52: #{tpu_custom_call.1} parent=1 // pred_region
      %129 = dma.done [#allocation9], 2048
    $region53: #{tpu_custom_call.1} parent=1 // pred_fallthru
      _
    // Predicated region
    $region54: #{tpu_custom_call.1} parent=1 // pred_check
      _
    $region55: #{tpu_custom_call.1} parent=1 // pred_check_branch
      %131 = sbr.rel (0) target = $region57
    $region56: #{tpu_custom_call.1} parent=1 // pred_region
      %132 = dma.done [#allocation9], 16
    $region57: #{tpu_custom_call.1} parent=1 // pred_fallthru
      _
    // Predicated region
    $region58: #{tpu_custom_call.1} parent=1 // pred_check
      _
    $region59: #{tpu_custom_call.1} parent=1 // pred_check_branch
      %134 = sbr.rel (0) target = $region61
    $region60: #{tpu_custom_call.1} parent=1 // pred_region
      %135 = dma.done [#allocation12], 2048
    $region61: #{tpu_custom_call.1} parent=1 // pred_fallthru
      _
    // Predicated region
    $region62: #{tpu_custom_call.1} parent=1 // pred_check
      _
    $region63: #{tpu_custom_call.1} parent=1 // pred_check_branch
      %137 = sbr.rel (0) target = $region65
    $region64: #{tpu_custom_call.1} parent=1 // pred_region
      %138 = dma.done [#allocation12], 16
    $region65: #{tpu_custom_call.1} parent=1 // pred_fallthru
      _
    // Predicated region
    $region66: #{tpu_custom_call.1} parent=1 // pred_check
      _
    $region67: #{tpu_custom_call.1} parent=1 // pred_check_branch
      %140 = sbr.rel (0) target = $region69
    $region68: #{tpu_custom_call.1} parent=1 // pred_region
      %141 = dma.done [#allocation15], 2048
    $region69: #{tpu_custom_call.1} parent=1 // pred_fallthru
      _
    // Predicated region
    $region70: #{tpu_custom_call.1} parent=1 // pred_check
      _
    $region71: #{tpu_custom_call.1} parent=1 // pred_check_branch
      %143 = sbr.rel (0) target = $region73
    $region72: #{tpu_custom_call.1} parent=1 // pred_region
      %144 = dma.done [#allocation15], 16
    $region73: #{tpu_custom_call.1} parent=1 // pred_fallthru
      _
    %v145 = vld [vmem:[#allocation2] sm:$0x3]
    %v146 = vld [vmem:[#allocation5] sm:$0xff]
    %v147 = vld [vmem:[#allocation5 + $0x8] sm:$0xff]
    %v148 = vld [vmem:[#allocation7] sm:$0x1]
    %v150 = vlaneseq
    %v151 = vshrl.u32 %v150, 7
    %v152 = vsub.s32 0, %v151
    %v153 = vrot.slane %v148, %v152
    %vm155 = vcmask 130048
    %v157 = vsel %vm155, %v145, 0
    %159 = vmatprep.subr.mxu0 0.0
    %160 = vmatpush1.msra.mxu0 %v146
    %161 = vmatprep.subr.mxu0 0.0
    %162 = vmatpush1.msra.mxu0 %v147
    %163 = vmatprep.subr.mxu0 0.0
    %164 = vmatpush1.msra.mxu0 0.0
    %165 = vmatprep.subr.mxu0 0.0
    %166 = vmatpush1.msra.mxu0 0.0
    %167 = vmatprep.subr.mxu0 0.0
    %168 = vmatpush1.msra.mxu0 0.0
    %169 = vmatprep.subr.mxu0 0.0
    %170 = vmatpush1.msra.mxu0 0.0
    %171 = vmatprep.subr.mxu0 0.0
    %172 = vmatpush1.msra.mxu0 0.0
    %173 = vmatprep.subr.mxu0 0.0
    %174 = vmatpush1.msra.mxu0 0.0
    %175 = vmatprep.subr.mxu0 0.0
    %176 = vmatpush1.msra.mxu0 0.0
    %177 = vmatprep.subr.mxu0 0.0
    %178 = vmatpush1.msra.mxu0 0.0
    %179 = vmatprep.subr.mxu0 0.0
    %180 = vmatpush1.msra.mxu0 0.0
    %181 = vmatprep.subr.mxu0 0.0
    %182 = vmatpush1.msra.mxu0 0.0
    %183 = vmatprep.subr.mxu0 0.0
    %184 = vmatpush1.msra.mxu0 0.0
    %185 = vmatprep.subr.mxu0 0.0
    %186 = vmatpush1.msra.mxu0 0.0
    %187 = vmatprep.subr.mxu0 0.0
    %188 = vmatpush1.msra.mxu0 0.0
    %189 = vmatprep.subr.mxu0 0.0
    %190 = vmatpush1.msra.mxu0 0.0
    %191 = vmatprep.subr.mxu0 0.0
    %192 = vmatpush1.msra.mxu0 0.0
    %193 = vmatprep.subr.mxu0 0.0
    %194 = vmatpush1.msra.mxu0 0.0
    %195 = vmatprep.subr.mxu0 0.0
    %196 = vmatpush1.msra.mxu0 0.0
    %197 = vmatprep.subr.mxu0 0.0
    %198 = vmatpush1.msra.mxu0 0.0
    %199 = vmatprep.subr.mxu0 0.0
    %200 = vmatpush1.msra.mxu0 0.0
    %201 = vmatprep.subr.mxu0 0.0
    %202 = vmatpush1.msra.mxu0 0.0
    %203 = vmatprep.subr.mxu0 0.0
    %204 = vmatpush1.msra.mxu0 0.0
    %205 = vmatprep.subr.mxu0 0.0
    %206 = vmatpush1.msra.mxu0 0.0
    %207 = vmatprep.subr.mxu0 0.0
    %208 = vmatpush1.msra.mxu0 0.0
    %209 = vmatprep.subr.mxu0 0.0
    %210 = vmatpush1.msra.mxu0 0.0
    %211 = vmatprep.subr.mxu0 0.0
    %212 = vmatpush1.msra.mxu0 0.0
    %213 = vmatprep.subr.mxu0 0.0
    %214 = vmatpush1.msra.mxu0 0.0
    %215 = vmatprep.subr.mxu0 0.0
    %216 = vmatpush1.msra.mxu0 0.0
    %217 = vmatprep.subr.mxu0 0.0
    %218 = vmatpush1.msra.mxu0 0.0
    %219 = vmatprep.subr.mxu0 0.0
    %220 = vmatpush1.msra.mxu0 0.0
    %221 = vmatprep.subr.mxu0 0.0
    %222 = vmatpush1.msra.mxu0 0.0
    %223 = vmatprep.mubr.f32.mxu0 0.0
    %224 = vmatmul.mubr.f32.gmra.mrb[0].mxu0 %v157
    %v225 = vpop.f32.mrb[0].mxu0
    %v226 = vadd.f32 %v153, %v225
    %v227 = vpop.f32.mrb[0].mxu0
    %228 = vdwg.mxu0
    %vm229 = vcmp.gt.f32.partialorder %v226, 0.0
    %v230 = vmul.f32 %v226, 0.2
    %v231 = vsel %vm229, %v226, %v230
    %v232 = vld [vmem:[#allocation8] sm:$0xff]
    %v233 = vld [vmem:[#allocation8 + $0x8] sm:$0xff]
    %v234 = vld [vmem:[#allocation8 + $0x10] sm:$0xff]
    %v235 = vld [vmem:[#allocation8 + $0x18] sm:$0xff]
    %v236 = vld [vmem:[#allocation8 + $0x20] sm:$0xff]
    %v237 = vld [vmem:[#allocation8 + $0x28] sm:$0xff]
    %v238 = vld [vmem:[#allocation8 + $0x30] sm:$0xff]
    %v239 = vld [vmem:[#allocation8 + $0x38] sm:$0xff]
    %v240 = vld [vmem:[#allocation8 + $0x40] sm:$0xff]
    %v241 = vld [vmem:[#allocation8 + $0x48] sm:$0xff]
    %v242 = vld [vmem:[#allocation8 + $0x50] sm:$0xff]
    %v243 = vld [vmem:[#allocation8 + $0x58] sm:$0xff]
    %v244 = vld [vmem:[#allocation8 + $0x60] sm:$0xff]
    %v245 = vld [vmem:[#allocation8 + $0x68] sm:$0xff]
    %v246 = vld [vmem:[#allocation8 + $0x70] sm:$0xff]
    %v247 = vld [vmem:[#allocation8 + $0x78] sm:$0xff]
    %v248 = vld [vmem:[#allocation10] sm:$0x1]
    %v250 = vlaneseq
    %v251 = vshrl.u32 %v250, 7
    %v252 = vsub.s32 0, %v251
    %v253 = vrot.slane %v248, %v252
    %255 = vmatprep.subr.mxu0 0.0
    %256 = vmatpush1.msra.mxu0 %v232
    %257 = vmatprep.subr.mxu0 0.0
    %258 = vmatpush1.msra.mxu0 %v233
    %259 = vmatprep.subr.mxu0 0.0
    %260 = vmatpush1.msra.mxu0 %v234
    %261 = vmatprep.subr.mxu0 0.0
    %262 = vmatpush1.msra.mxu0 %v235
    %263 = vmatprep.subr.mxu0 0.0
    %264 = vmatpush1.msra.mxu0 %v236
    %265 = vmatprep.subr.mxu0 0.0
    %266 = vmatpush1.msra.mxu0 %v237
    %267 = vmatprep.subr.mxu0 0.0
    %268 = vmatpush1.msra.mxu0 %v238
    %269 = vmatprep.subr.mxu0 0.0
    %270 = vmatpush1.msra.mxu0 %v239
    %271 = vmatprep.subr.mxu0 0.0
    %272 = vmatpush1.msra.mxu0 %v240
    %273 = vmatprep.subr.mxu0 0.0
    %274 = vmatpush1.msra.mxu0 %v241
    %275 = vmatprep.subr.mxu0 0.0
    %276 = vmatpush1.msra.mxu0 %v242
    %277 = vmatprep.subr.mxu0 0.0
    %278 = vmatpush1.msra.mxu0 %v243
    %279 = vmatprep.subr.mxu0 0.0
    %280 = vmatpush1.msra.mxu0 %v244
    %281 = vmatprep.subr.mxu0 0.0
    %282 = vmatpush1.msra.mxu0 %v245
    %283 = vmatprep.subr.mxu0 0.0
    %284 = vmatpush1.msra.mxu0 %v246
    %285 = vmatprep.subr.mxu0 0.0
    %286 = vmatpush1.msra.mxu0 %v247
    %287 = vmatprep.subr.mxu0 0.0
    %288 = vmatpush1.msra.mxu0 0.0
    %289 = vmatprep.subr.mxu0 0.0
    %290 = vmatpush1.msra.mxu0 0.0
    %291 = vmatprep.subr.mxu0 0.0
    %292 = vmatpush1.msra.mxu0 0.0
    %293 = vmatprep.subr.mxu0 0.0
    %294 = vmatpush1.msra.mxu0 0.0
    %295 = vmatprep.subr.mxu0 0.0
    %296 = vmatpush1.msra.mxu0 0.0
    %297 = vmatprep.subr.mxu0 0.0
    %298 = vmatpush1.msra.mxu0 0.0
    %299 = vmatprep.subr.mxu0 0.0
    %300 = vmatpush1.msra.mxu0 0.0
    %301 = vmatprep.subr.mxu0 0.0
    %302 = vmatpush1.msra.mxu0 0.0
    %303 = vmatprep.subr.mxu0 0.0
    %304 = vmatpush1.msra.mxu0 0.0
    %305 = vmatprep.subr.mxu0 0.0
    %306 = vmatpush1.msra.mxu0 0.0
    %307 = vmatprep.subr.mxu0 0.0
    %308 = vmatpush1.msra.mxu0 0.0
    %309 = vmatprep.subr.mxu0 0.0
    %310 = vmatpush1.msra.mxu0 0.0
    %311 = vmatprep.subr.mxu0 0.0
    %312 = vmatpush1.msra.mxu0 0.0
    %313 = vmatprep.subr.mxu0 0.0
    %314 = vmatpush1.msra.mxu0 0.0
    %315 = vmatprep.subr.mxu0 0.0
    %316 = vmatpush1.msra.mxu0 0.0
    %317 = vmatprep.subr.mxu0 0.0
    %318 = vmatpush1.msra.mxu0 0.0
    %319 = vmatprep.mubr.f32.mxu0 0.0
    %320 = vmatmul.mubr.f32.gmra.mrb[0].mxu0 %v231
    %v321 = vpop.f32.mrb[0].mxu0
    %v322 = vadd.f32 %v253, %v321
    %v323 = vpop.f32.mrb[0].mxu0
    %324 = vdwg.mxu0
    %vm325 = vcmp.gt.f32.partialorder %v322, 0.0
    %v326 = vmul.f32 %v322, 0.2
    %v327 = vsel %vm325, %v322, %v326
    %v328 = vld [vmem:[#allocation11] sm:$0xff]
    %v329 = vld [vmem:[#allocation11 + $0x8] sm:$0xff]
    %v330 = vld [vmem:[#allocation11 + $0x10] sm:$0xff]
    %v331 = vld [vmem:[#allocation11 + $0x18] sm:$0xff]
    %v332 = vld [vmem:[#allocation11 + $0x20] sm:$0xff]
    %v333 = vld [vmem:[#allocation11 + $0x28] sm:$0xff]
    %v334 = vld [vmem:[#allocation11 + $0x30] sm:$0xff]
    %v335 = vld [vmem:[#allocation11 + $0x38] sm:$0xff]
    %v336 = vld [vmem:[#allocation11 + $0x40] sm:$0xff]
    %v337 = vld [vmem:[#allocation11 + $0x48] sm:$0xff]
    %v338 = vld [vmem:[#allocation11 + $0x50] sm:$0xff]
    %v339 = vld [vmem:[#allocation11 + $0x58] sm:$0xff]
    %v340 = vld [vmem:[#allocation11 + $0x60] sm:$0xff]
    %v341 = vld [vmem:[#allocation11 + $0x68] sm:$0xff]
    %v342 = vld [vmem:[#allocation11 + $0x70] sm:$0xff]
    %v343 = vld [vmem:[#allocation11 + $0x78] sm:$0xff]
    %v344 = vld [vmem:[#allocation13] sm:$0x1]
    %v346 = vlaneseq
    %v347 = vshrl.u32 %v346, 7
    %v348 = vsub.s32 0, %v347
    %v349 = vrot.slane %v344, %v348
    %351 = vmatprep.subr.mxu0 0.0
    %352 = vmatpush1.msra.mxu0 %v328
    %353 = vmatprep.subr.mxu0 0.0
    %354 = vmatpush1.msra.mxu0 %v329
    %355 = vmatprep.subr.mxu0 0.0
    %356 = vmatpush1.msra.mxu0 %v330
    %357 = vmatprep.subr.mxu0 0.0
    %358 = vmatpush1.msra.mxu0 %v331
    %359 = vmatprep.subr.mxu0 0.0
    %360 = vmatpush1.msra.mxu0 %v332
    %361 = vmatprep.subr.mxu0 0.0
    %362 = vmatpush1.msra.mxu0 %v333
    %363 = vmatprep.subr.mxu0 0.0
    %364 = vmatpush1.msra.mxu0 %v334
    %365 = vmatprep.subr.mxu0 0.0
    %366 = vmatpush1.msra.mxu0 %v335
    %367 = vmatprep.subr.mxu0 0.0
    %368 = vmatpush1.msra.mxu0 %v336
    %369 = vmatprep.subr.mxu0 0.0
    %370 = vmatpush1.msra.mxu0 %v337
    %371 = vmatprep.subr.mxu0 0.0
    %372 = vmatpush1.msra.mxu0 %v338
    %373 = vmatprep.subr.mxu0 0.0
    %374 = vmatpush1.msra.mxu0 %v339
    %375 = vmatprep.subr.mxu0 0.0
    %376 = vmatpush1.msra.mxu0 %v340
    %377 = vmatprep.subr.mxu0 0.0
    %378 = vmatpush1.msra.mxu0 %v341
    %379 = vmatprep.subr.mxu0 0.0
    %380 = vmatpush1.msra.mxu0 %v342
    %381 = vmatprep.subr.mxu0 0.0
    %382 = vmatpush1.msra.mxu0 %v343
    %383 = vmatprep.subr.mxu0 0.0
    %384 = vmatpush1.msra.mxu0 0.0
    %385 = vmatprep.subr.mxu0 0.0
    %386 = vmatpush1.msra.mxu0 0.0
    %387 = vmatprep.subr.mxu0 0.0
    %388 = vmatpush1.msra.mxu0 0.0
    %389 = vmatprep.subr.mxu0 0.0
    %390 = vmatpush1.msra.mxu0 0.0
    %391 = vmatprep.subr.mxu0 0.0
    %392 = vmatpush1.msra.mxu0 0.0
    %393 = vmatprep.subr.mxu0 0.0
    %394 = vmatpush1.msra.mxu0 0.0
    %395 = vmatprep.subr.mxu0 0.0
    %396 = vmatpush1.msra.mxu0 0.0
    %397 = vmatprep.subr.mxu0 0.0
    %398 = vmatpush1.msra.mxu0 0.0
    %399 = vmatprep.subr.mxu0 0.0
    %400 = vmatpush1.msra.mxu0 0.0
    %401 = vmatprep.subr.mxu0 0.0
    %402 = vmatpush1.msra.mxu0 0.0
    %403 = vmatprep.subr.mxu0 0.0
    %404 = vmatpush1.msra.mxu0 0.0
    %405 = vmatprep.subr.mxu0 0.0
    %406 = vmatpush1.msra.mxu0 0.0
    %407 = vmatprep.subr.mxu0 0.0
    %408 = vmatpush1.msra.mxu0 0.0
    %409 = vmatprep.subr.mxu0 0.0
    %410 = vmatpush1.msra.mxu0 0.0
    %411 = vmatprep.subr.mxu0 0.0
    %412 = vmatpush1.msra.mxu0 0.0
    %413 = vmatprep.subr.mxu0 0.0
    %414 = vmatpush1.msra.mxu0 0.0
    %415 = vmatprep.mubr.f32.mxu0 0.0
    %416 = vmatmul.mubr.f32.gmra.mrb[0].mxu0 %v327
    %v417 = vpop.f32.mrb[0].mxu0
    %v418 = vadd.f32 %v349, %v417
    %v419 = vpop.f32.mrb[0].mxu0
    %420 = vdwg.mxu0
    %vm421 = vcmp.gt.f32.partialorder %v418, 0.0
    %v422 = vmul.f32 %v418, 0.2
    %v423 = vsel %vm421, %v418, %v422
    %v424 = vld [vmem:[#allocation14] sm:$0xff]
    %v425 = vld [vmem:[#allocation14 + $0x8] sm:$0xff]
    %v426 = vld [vmem:[#allocation14 + $0x10] sm:$0xff]
    %v427 = vld [vmem:[#allocation14 + $0x18] sm:$0xff]
    %v428 = vld [vmem:[#allocation14 + $0x20] sm:$0xff]
    %v429 = vld [vmem:[#allocation14 + $0x28] sm:$0xff]
    %v430 = vld [vmem:[#allocation14 + $0x30] sm:$0xff]
    %v431 = vld [vmem:[#allocation14 + $0x38] sm:$0xff]
    %v432 = vld [vmem:[#allocation14 + $0x40] sm:$0xff]
    %v433 = vld [vmem:[#allocation14 + $0x48] sm:$0xff]
    %v434 = vld [vmem:[#allocation14 + $0x50] sm:$0xff]
    %v435 = vld [vmem:[#allocation14 + $0x58] sm:$0xff]
    %v436 = vld [vmem:[#allocation14 + $0x60] sm:$0xff]
    %v437 = vld [vmem:[#allocation14 + $0x68] sm:$0xff]
    %v438 = vld [vmem:[#allocation14 + $0x70] sm:$0xff]
    %v439 = vld [vmem:[#allocation14 + $0x78] sm:$0xff]
    %v440 = vld [vmem:[#allocation16] sm:$0x1]
    %v442 = vlaneseq
    %v443 = vshrl.u32 %v442, 7
    %v444 = vsub.s32 0, %v443
    %v445 = vrot.slane %v440, %v444
    %447 = vmatprep.subr.mxu0 0.0
    %448 = vmatpush1.msra.mxu0 %v424
    %449 = vmatprep.subr.mxu0 0.0
    %450 = vmatpush1.msra.mxu0 %v425
    %451 = vmatprep.subr.mxu0 0.0
    %452 = vmatpush1.msra.mxu0 %v426
    %453 = vmatprep.subr.mxu0 0.0
    %454 = vmatpush1.msra.mxu0 %v427
    %455 = vmatprep.subr.mxu0 0.0
    %456 = vmatpush1.msra.mxu0 %v428
    %457 = vmatprep.subr.mxu0 0.0
    %458 = vmatpush1.msra.mxu0 %v429
    %459 = vmatprep.subr.mxu0 0.0
    %460 = vmatpush1.msra.mxu0 %v430
    %461 = vmatprep.subr.mxu0 0.0
    %462 = vmatpush1.msra.mxu0 %v431
    %463 = vmatprep.subr.mxu0 0.0
    %464 = vmatpush1.msra.mxu0 %v432
    %465 = vmatprep.subr.mxu0 0.0
    %466 = vmatpush1.msra.mxu0 %v433
    %467 = vmatprep.subr.mxu0 0.0
    %468 = vmatpush1.msra.mxu0 %v434
    %469 = vmatprep.subr.mxu0 0.0
    %470 = vmatpush1.msra.mxu0 %v435
    %471 = vmatprep.subr.mxu0 0.0
    %472 = vmatpush1.msra.mxu0 %v436
    %473 = vmatprep.subr.mxu0 0.0
    %474 = vmatpush1.msra.mxu0 %v437
    %475 = vmatprep.subr.mxu0 0.0
    %476 = vmatpush1.msra.mxu0 %v438
    %477 = vmatprep.subr.mxu0 0.0
    %478 = vmatpush1.msra.mxu0 %v439
    %479 = vmatprep.subr.mxu0 0.0
    %480 = vmatpush1.msra.mxu0 0.0
    %481 = vmatprep.subr.mxu0 0.0
    %482 = vmatpush1.msra.mxu0 0.0
    %483 = vmatprep.subr.mxu0 0.0
    %484 = vmatpush1.msra.mxu0 0.0
    %485 = vmatprep.subr.mxu0 0.0
    %486 = vmatpush1.msra.mxu0 0.0
    %487 = vmatprep.subr.mxu0 0.0
    %488 = vmatpush1.msra.mxu0 0.0
    %489 = vmatprep.subr.mxu0 0.0
    %490 = vmatpush1.msra.mxu0 0.0
    %491 = vmatprep.subr.mxu0 0.0
    %492 = vmatpush1.msra.mxu0 0.0
    %493 = vmatprep.subr.mxu0 0.0
    %494 = vmatpush1.msra.mxu0 0.0
    %495 = vmatprep.subr.mxu0 0.0
    %496 = vmatpush1.msra.mxu0 0.0
    %497 = vmatprep.subr.mxu0 0.0
    %498 = vmatpush1.msra.mxu0 0.0
    %499 = vmatprep.subr.mxu0 0.0
    %500 = vmatpush1.msra.mxu0 0.0
    %501 = vmatprep.subr.mxu0 0.0
    %502 = vmatpush1.msra.mxu0 0.0
    %503 = vmatprep.subr.mxu0 0.0
    %504 = vmatpush1.msra.mxu0 0.0
    %505 = vmatprep.subr.mxu0 0.0
    %506 = vmatpush1.msra.mxu0 0.0
    %507 = vmatprep.subr.mxu0 0.0
    %508 = vmatpush1.msra.mxu0 0.0
    %509 = vmatprep.subr.mxu0 0.0
    %510 = vmatpush1.msra.mxu0 0.0
    %511 = vmatprep.mubr.f32.mxu0 0.0
    %512 = vmatmul.mubr.f32.gmra.mrb[0].mxu0 %v423
    %v513 = vpop.f32.mrb[0].mxu0
    %v514 = vadd.f32 %v445, %v513
    %v515 = vpop.f32.mrb[0].mxu0
    %516 = vdwg.mxu0
    %v517 = vadd.f32 %v145, %v514
    %vm518 = vcmask 123904
    %519 = vst.msk [vmem:[#allocation17] sm:$0x3] %vm518, %v517
    // Predicated region
    $region74: #{tpu_custom_call.1} parent=1 // pred_check
      _
    $region75: #{tpu_custom_call.1} parent=1 // pred_check_branch
      %521 = sbr.rel (0) target = $region77
    $region76: #{tpu_custom_call.1} parent=1 // pred_region
      %s523 = ssub.s32 32, 32
      %524 = vsyncadd [#allocation4], %s523
      %s526 = sshll.u32 [#allocation17], 4
      %s527 = int_to_ptr.vmem [resolvable:$true] %s526
      %529 = dma.vmem_to_hbm [thread:$0]  %s527, 32, %s9, [#allocation4]
    $region77: #{tpu_custom_call.1} parent=1 // pred_fallthru
      _
    // Predicated region
    $region78: #{tpu_custom_call.1} parent=1 // pred_check
      _
    $region79: #{tpu_custom_call.1} parent=1 // pred_check_branch
      %531 = sbr.rel (0) target = $region81
    $region80: #{tpu_custom_call.1} parent=1 // pred_region
      %532 = dma.done [#allocation4], 32
    $region81: #{tpu_custom_call.1} parent=1 // pred_fallthru
      _
    %533 = vsyncpa [#allocation3], 1
    %534 = vsyncpa [#allocation6], 1
    %535 = vsyncpa [#allocation9], 1
    %536 = vsyncpa [#allocation12], 1
    %537 = vsyncpa [#allocation15], 1
    %538 = vsyncpa [#allocation4], 1

</llo_original>
